<compile_context>
chip_gen: v7x
topology: tpu7x:2x2x1
jax: 0.10.0
libtpu: 0.0.40
codegen_flags: <defaults>
</compile_context>

<pallas_src>
import jax
import jax.numpy as jnp
from jax.experimental import pallas as pl
from jax.experimental.pallas import tpu as pltpu

EPS = 1e-5          # PyTorch BatchNorm2d default
TILE_M = 256        # row tile (multiple of 8). 512-1024 preferred for large
                    # real shapes on v6e/v7x; keep the double-buffered patch
                    # tile + resident weights well under the scoped VMEM limit
                    # (v7x: 64 MiB physical / 32 MiB default scoped).


def round_up(a, b):
    return (a + b - 1) // b * b


# ---------------------------------------------------------------------------
# Kernel 1: conv matmul (bf16 MXU, f32 acc) + per-channel sum / sumsq
# accumulation across the M grid axis (reduction axis -> "arbitrary").
# ---------------------------------------------------------------------------
def conv_stats_kernel(patch_ref, w_ref, conv_ref, sum_ref, sq_ref):
    conv = jnp.dot(patch_ref[...], w_ref[...],
                   preferred_element_type=jnp.float32)
    conv_ref[...] = conv

    @pl.when(pl.program_id(0) == 0)
    def _():
        sum_ref[...] = jnp.zeros_like(sum_ref)
        sq_ref[...] = jnp.zeros_like(sq_ref)

    # Zero-padded rows contribute 0 to both sums; the wrapper divides by the
    # true (unpadded) M, so the statistics are exact.
    sum_ref[...] += jnp.sum(conv, axis=0, keepdims=True)
    sq_ref[...] += jnp.sum(conv * conv, axis=0, keepdims=True)


# ---------------------------------------------------------------------------
# Kernel 2: folded BN (single FMA per element) + ReLU. Lane-dense output.
# ---------------------------------------------------------------------------
def bn_relu_kernel(conv_ref, scale_ref, shift_ref, out_ref):
    out_ref[...] = jnp.maximum(
        conv_ref[...] * scale_ref[...] + shift_ref[...], 0.0)


def im2col_nhwc(x_nhwc, kh, kw, stride, pad):
    """Extract conv patches. Returns (N*OH*OW, KH*KW*C), plus (OH, OW)."""
    n, h, w, c = x_nhwc.shape
    oh = (h + 2 * pad - kh) // stride + 1
    ow = (w + 2 * pad - kw) // stride + 1
    xp = jnp.pad(x_nhwc, ((0, 0), (pad, pad), (pad, pad), (0, 0)))
    cols = []
    for i in range(kh):
        for j in range(kw):
            cols.append(xp[:, i:i + oh * stride:stride,
                           j:j + ow * stride:stride, :])
    patches = jnp.stack(cols, axis=3)                 # (N, OH, OW, KH*KW, C)
    patches = patches.reshape(n * oh * ow, kh * kw * c)
    return patches, oh, ow


def conv_bn_relu(x_nhwc, weight, gamma, beta, *, stride=1, pad=0,
                 tile_m=TILE_M):
    """Conv2d(no bias) -> BatchNorm2d(batch stats) -> ReLU.

    x_nhwc: (N, H, W, C); weight: (OC, IC, KH, KW); gamma/beta: (OC,).
    Returns NHWC (N, OH, OW, OC) float32.
    """
    n, h, w, c = x_nhwc.shape
    oc, ic, kh, kw = weight.shape
    assert ic == c

    # --- im2col (identity reshape for the 1x1 / stride 1 / no-pad case) ----
    if kh == 1 and kw == 1 and stride == 1 and pad == 0:
        patches, oh, ow = x_nhwc.reshape(n * h * w, c), h, w
    else:
        patches, oh, ow = im2col_nhwc(x_nhwc, kh, kw, stride, pad)
    m, k = patches.shape

    # --- weight (OC,IC,KH,KW) -> (KH*KW*IC, OC), pad OC to 128 (lane-dense) -
    ocp = round_up(oc, 128)
    w_mat = jnp.transpose(weight, (2, 3, 1, 0)).reshape(k, oc)
    w_mat = jnp.pad(w_mat, ((0, 0), (0, ocp - oc)))

    # --- pad M so the grid tiles evenly (zero rows are harmless, see kernel) -
    tm = min(tile_m, round_up(m, 8))
    mp = round_up(m, tm)
    num_tiles = mp // tm
    patches_p = jnp.pad(patches, ((0, mp - m), (0, 0)))

    # bf16 MXU feed (halves HBM traffic of the im2col matrix), f32 accumulate.
    patches_bf = patches_p.astype(jnp.bfloat16)
    w_bf = w_mat.astype(jnp.bfloat16)

    conv, s, sq = pl.pallas_call(
        conv_stats_kernel,
        out_shape=(jax.ShapeDtypeStruct((mp, ocp), jnp.float32),
                   jax.ShapeDtypeStruct((1, ocp), jnp.float32),
                   jax.ShapeDtypeStruct((1, ocp), jnp.float32)),
        grid=(num_tiles,),
        in_specs=[pl.BlockSpec((tm, k), lambda i: (i, 0)),
                  pl.BlockSpec((k, ocp), lambda i: (0, 0))],
        out_specs=(pl.BlockSpec((tm, ocp), lambda i: (i, 0)),
                   pl.BlockSpec((1, ocp), lambda i: (0, 0)),
                   pl.BlockSpec((1, ocp), lambda i: (0, 0))),
        compiler_params=pltpu.CompilerParams(
            dimension_semantics=("arbitrary",)),
    )(patches_bf, w_bf)

    # --- finalize per-channel BN scale/shift (tiny, done in JAX, f32) -------
    # NOTE: E[x^2]-E[x]^2 in f32; clamped at 0 to guard against cancellation.
    inv_m = 1.0 / float(m)
    mean = s * inv_m
    var = jnp.maximum(sq * inv_m - mean * mean, 0.0)
    inv_std = jax.lax.rsqrt(var + EPS)
    gamma_p = jnp.pad(gamma.astype(jnp.float32), (0, ocp - oc)).reshape(1, ocp)
    beta_p = jnp.pad(beta.astype(jnp.float32), (0, ocp - oc)).reshape(1, ocp)
    scale = gamma_p * inv_std                 # gamma / sqrt(var + eps)
    shift = beta_p - mean * scale             # beta - mean * scale

    out_p = pl.pallas_call(
        bn_relu_kernel,
        out_shape=jax.ShapeDtypeStruct((mp, ocp), jnp.float32),
        grid=(num_tiles,),
        in_specs=[pl.BlockSpec((tm, ocp), lambda i: (i, 0)),
                  pl.BlockSpec((1, ocp), lambda i: (0, 0)),
                  pl.BlockSpec((1, ocp), lambda i: (0, 0))],
        out_specs=pl.BlockSpec((tm, ocp), lambda i: (i, 0)),
        compiler_params=pltpu.CompilerParams(
            dimension_semantics=("parallel",)),
    )(conv, scale, shift)

    return out_p[:m, :oc].reshape(n, oh, ow, oc)


def maxpool2d_3x3_s1_p1(x_nhwc):
    """MaxPool2d(kernel_size=3, stride=1, padding=1), NHWC."""
    n, h, w, c = x_nhwc.shape
    xp = jnp.pad(x_nhwc, ((0, 0), (1, 1), (1, 1), (0, 0)),
                 constant_values=-jnp.inf)
    out = None
    for i in range(3):
        for j in range(3):
            win = xp[:, i:i + h, j:j + w, :]
            out = win if out is None else jnp.maximum(out, win)
    return out


def inception_block_forward(x_nchw, params):
    """torch.cat([branch1, branch2, branch3, branch4], dim=1) equivalent."""
    x = jnp.transpose(x_nchw, (0, 2, 3, 1))          # NCHW -> NHWC

    # Fused stage-1 1x1 convs (branch1 / branch2-reduce / branch3-reduce):
    # same patches, concatenated OC -> one lane-dense pallas_call.
    w_cat = jnp.concatenate([params["b1_w"], params["b2r_w"],
                             params["b3r_w"]], axis=0)
    g_cat = jnp.concatenate([params["b1_g"], params["b2r_g"], params["b3r_g"]])
    be_cat = jnp.concatenate([params["b1_b"], params["b2r_b"],
                              params["b3r_b"]])
    y = conv_bn_relu(x, w_cat, g_cat, be_cat, stride=1, pad=0)

    o1 = params["b1_w"].shape[0]
    o2 = params["b2r_w"].shape[0]
    o3 = params["b3r_w"].shape[0]
    b1 = y[..., :o1]
    r2 = y[..., o1:o1 + o2]
    r3 = y[..., o1 + o2:o1 + o2 + o3]

    b2 = conv_bn_relu(r2, params["b2_w"], params["b2_g"], params["b2_b"],
                      stride=1, pad=1)                # 3x3, padding=1
    b3 = conv_bn_relu(r3, params["b3_w"], params["b3_g"], params["b3_b"],
                      stride=1, pad=2)                # 5x5, padding=2

    mp = maxpool2d_3x3_s1_p1(x)
    b4 = conv_bn_relu(mp, params["b4_w"], params["b4_g"], params["b4_b"],
                      stride=1, pad=0)                # 1x1 after maxpool

    out = jnp.concatenate([b1, b2, b3, b4], axis=-1)  # concat on channels
    return jnp.transpose(out, (0, 3, 1, 2))           # NHWC -> NCHW


if __name__ == "__main__":
    # inception_block(in_channels=4, out_1x1=8, red_3x3=4, out_3x3=8,
    #                 red_5x5=4, out_5x5=8, out_1x1maxpool=8); x NCHW.
    key = jax.random.PRNGKey(0)
    keys = jax.random.split(key, 7)

    N, C, H, W = 2, 4, 16, 16
    out_1x1, red_3x3, out_3x3 = 8, 4, 8
    red_5x5, out_5x5, out_pool = 4, 8, 8

    x = jax.random.normal(keys[0], (N, C, H, W), dtype=jnp.float32)

    def conv_w(k, oc, ic, kh, kw):
        bound = 1.0 / ((ic * kh * kw) ** 0.5)
        return jax.random.uniform(k, (oc, ic, kh, kw), jnp.float32,
                                  -bound, bound)

    # BN affine defaults: gamma=1, beta=0. Conv biases are omitted: the
    # train-mode BN mean subtraction cancels them exactly (same forward).
    params = {
        "b1_w": conv_w(keys[1], out_1x1, C, 1, 1),
        "b1_g": jnp.ones((out_1x1,), jnp.float32),
        "b1_b": jnp.zeros((out_1x1,), jnp.float32),
        "b2r_w": conv_w(keys[2], red_3x3, C, 1, 1),
        "b2r_g": jnp.ones((red_3x3,), jnp.float32),
        "b2r_b": jnp.zeros((red_3x3,), jnp.float32),
        "b2_w": conv_w(keys[3], out_3x3, red_3x3, 3, 3),
        "b2_g": jnp.ones((out_3x3,), jnp.float32),
        "b2_b": jnp.zeros((out_3x3,), jnp.float32),
        "b3r_w": conv_w(keys[4], red_5x5, C, 1, 1),
        "b3r_g": jnp.ones((red_5x5,), jnp.float32),
        "b3r_b": jnp.zeros((red_5x5,), jnp.float32),
        "b3_w": conv_w(keys[5], out_5x5, red_5x5, 5, 5),
        "b3_g": jnp.ones((out_5x5,), jnp.float32),
        "b3_b": jnp.zeros((out_5x5,), jnp.float32),
        "b4_w": conv_w(keys[6], out_pool, C, 1, 1),
        "b4_g": jnp.ones((out_pool,), jnp.float32),
        "b4_b": jnp.zeros((out_pool,), jnp.float32),
    }

    forward = jax.jit(inception_block_forward)
    out = forward(x, params)
    jax.block_until_ready(out)
    assert out.shape == (N, out_1x1 + out_3x3 + out_5x5 + out_pool, H, W)
    print("KERNEL_OK")
</pallas_src>

<mosaic_0001>
module attributes {stable_mosaic.version = 11 : i64} {
  func.func @conv_stats_kernel(%arg0: i32, %arg1: memref<256x4xbf16, #tpu.memory_space<vmem>>, %arg2: memref<4x128xbf16, #tpu.memory_space<vmem>>, %arg3: memref<256x128xf32, #tpu.memory_space<vmem>>, %arg4: memref<1x128xf32, #tpu.memory_space<vmem>>, %arg5: memref<1x128xf32, #tpu.memory_space<vmem>>) attributes {dimension_semantics = [#tpu.dimension_semantics<arbitrary>], iteration_bounds = array<i64: 2>, scalar_prefetch = 0 : i64, scratch_operands = 0 : i64, tpu.core_type = #tpu.core_type<tc>, window_params = [{transform_indices = @transform_0, window_bounds = array<i64: 256, 4>}, {pipeline_mode = #tpu.pipeline_mode<synchronous>, transform_indices = @transform_1, window_bounds = array<i64: 4, 128>}, {transform_indices = @transform_2, window_bounds = array<i64: 256, 128>}, {pipeline_mode = #tpu.pipeline_mode<synchronous>, transform_indices = @transform_3, window_bounds = array<i64: 1, 128>}, {pipeline_mode = #tpu.pipeline_mode<synchronous>, transform_indices = @transform_4, window_bounds = array<i64: 1, 128>}]} {
    %c0 = arith.constant 0 : index
    %c0_0 = arith.constant 0 : index
    %0 = vector.load %arg1[%c0, %c0_0] : memref<256x4xbf16, #tpu.memory_space<vmem>>, vector<256x4xbf16>
    %c0_1 = arith.constant 0 : index
    %c0_2 = arith.constant 0 : index
    %1 = vector.load %arg2[%c0_1, %c0_2] : memref<4x128xbf16, #tpu.memory_space<vmem>>, vector<4x128xbf16>
    %cst = arith.constant dense<0.000000e+00> : vector<256x128xf32>
    %2 = tpu.matmul %0, %1, %cst {dimension_numbers = #tpu.dot_dimension_numbers<[1], [0], [0], [1], [0, 0, 1, 1], [], []>} : vector<256x4xbf16>, vector<4x128xbf16>, vector<256x128xf32> -> vector<256x128xf32>
    %c0_3 = arith.constant 0 : index
    %c0_4 = arith.constant 0 : index
    %3 = vector.load %arg3[%c0_3, %c0_4] : memref<256x128xf32, #tpu.memory_space<vmem>>, vector<256x128xf32>
    tpu.vector_store %arg3[%c0_3, %c0_4], %2 {strides = array<i32>} : memref<256x128xf32, #tpu.memory_space<vmem>>, vector<256x128xf32>,
    %c0_i32 = arith.constant 0 : i32
    %4 = arith.cmpi eq, %arg0, %c0_i32 : i32
    %5 = arith.extui %4 : i1 to i32
    %c0_i32_5 = arith.constant 0 : i32
    %6 = arith.cmpi ne, %5, %c0_i32_5 : i32
    scf.if %6 {
      %cst_16 = arith.constant 0.000000e+00 : f32
      %18 = vector.broadcast %cst_16 : f32 to vector<1x128xf32>
      %c0_17 = arith.constant 0 : index
      %c0_18 = arith.constant 0 : index
      %19 = vector.load %arg4[%c0_17, %c0_18] : memref<1x128xf32, #tpu.memory_space<vmem>>, vector<1x128xf32>
      tpu.vector_store %arg4[%c0_17, %c0_18], %18 {strides = array<i32>} : memref<1x128xf32, #tpu.memory_space<vmem>>, vector<1x128xf32>,
      %cst_19 = arith.constant 0.000000e+00 : f32
      %20 = vector.broadcast %cst_19 : f32 to vector<1x128xf32>
      %c0_20 = arith.constant 0 : index
      %c0_21 = arith.constant 0 : index
      %21 = vector.load %arg5[%c0_20, %c0_21] : memref<1x128xf32, #tpu.memory_space<vmem>>, vector<1x128xf32>
      tpu.vector_store %arg5[%c0_20, %c0_21], %20 {strides = array<i32>} : memref<1x128xf32, #tpu.memory_space<vmem>>, vector<1x128xf32>,
    } else {
    }
    %c0_6 = arith.constant 0 : index
    %c0_7 = arith.constant 0 : index
    %7 = vector.load %arg4[%c0_6, %c0_7] : memref<1x128xf32, #tpu.memory_space<vmem>>, vector<1x128xf32>
    %cst_8 = arith.constant dense<0.000000e+00> : vector<128xf32>
    %8 = vector.multi_reduction <add>, %2, %cst_8 [0] : vector<256x128xf32> to vector<128xf32>
    %9 = vector.shape_cast %8 : vector<128xf32> to vector<1x128xf32>
    %10 = arith.addf %7, %9 : vector<1x128xf32>
    %c0_9 = arith.constant 0 : index
    %c0_10 = arith.constant 0 : index
    %11 = vector.load %arg4[%c0_9, %c0_10] : memref<1x128xf32, #tpu.memory_space<vmem>>, vector<1x128xf32>
    tpu.vector_store %arg4[%c0_9, %c0_10], %10 {strides = array<i32>} : memref<1x128xf32, #tpu.memory_space<vmem>>, vector<1x128xf32>,
    %c0_11 = arith.constant 0 : index
    %c0_12 = arith.constant 0 : index
    %12 = vector.load %arg5[%c0_11, %c0_12] : memref<1x128xf32, #tpu.memory_space<vmem>>, vector<1x128xf32>
    %13 = arith.mulf %2, %2 : vector<256x128xf32>
    %cst_13 = arith.constant dense<0.000000e+00> : vector<128xf32>
    %14 = vector.multi_reduction <add>, %13, %cst_13 [0] : vector<256x128xf32> to vector<128xf32>
    %15 = vector.shape_cast %14 : vector<128xf32> to vector<1x128xf32>
    %16 = arith.addf %12, %15 : vector<1x128xf32>
    %c0_14 = arith.constant 0 : index
    %c0_15 = arith.constant 0 : index
    %17 = vector.load %arg5[%c0_14, %c0_15] : memref<1x128xf32, #tpu.memory_space<vmem>>, vector<1x128xf32>
    tpu.vector_store %arg5[%c0_14, %c0_15], %16 {strides = array<i32>} : memref<1x128xf32, #tpu.memory_space<vmem>>, vector<1x128xf32>,
    return
  }
  func.func @transform_0(%arg0: i32) -> (i32, i32) {
    %c0_i32 = arith.constant 0 : i32
    %c0_i32_0 = arith.constant 0 : i32
    return %arg0, %c0_i32 : i32, i32
  }
  func.func @transform_1(%arg0: i32) -> (i32, i32) {
    %c0_i32 = arith.constant 0 : i32
    %c0_i32_0 = arith.constant 0 : i32
    %c0_i32_1 = arith.constant 0 : i32
    return %c0_i32, %c0_i32_0 : i32, i32
  }
  func.func @transform_2(%arg0: i32) -> (i32, i32) {
    %c0_i32 = arith.constant 0 : i32
    %c0_i32_0 = arith.constant 0 : i32
    return %arg0, %c0_i32 : i32, i32
  }
  func.func @transform_3(%arg0: i32) -> (i32, i32) {
    %c0_i32 = arith.constant 0 : i32
    %c0_i32_0 = arith.constant 0 : i32
    %c0_i32_1 = arith.constant 0 : i32
    return %c0_i32, %c0_i32_0 : i32, i32
  }
  func.func @transform_4(%arg0: i32) -> (i32, i32) {
    %c0_i32 = arith.constant 0 : i32
    %c0_i32_0 = arith.constant 0 : i32
    %c0_i32_1 = arith.constant 0 : i32
    return %c0_i32, %c0_i32_0 : i32, i32
  }
}

module attributes {stable_mosaic.version = 11 : i64} {
  func.func @bn_relu_kernel(%arg0: i32, %arg1: memref<256x128xf32, #tpu.memory_space<vmem>>, %arg2: memref<1x128xf32, #tpu.memory_space<vmem>>, %arg3: memref<1x128xf32, #tpu.memory_space<vmem>>, %arg4: memref<256x128xf32, #tpu.memory_space<vmem>>) attributes {dimension_semantics = [#tpu.dimension_semantics<parallel>], iteration_bounds = array<i64: 2>, scalar_prefetch = 0 : i64, scratch_operands = 0 : i64, tpu.core_type = #tpu.core_type<tc>, window_params = [{transform_indices = @transform_0, window_bounds = array<i64: 256, 128>}, {pipeline_mode = #tpu.pipeline_mode<synchronous>, transform_indices = @transform_1, window_bounds = array<i64: 1, 128>}, {pipeline_mode = #tpu.pipeline_mode<synchronous>, transform_indices = @transform_2, window_bounds = array<i64: 1, 128>}, {transform_indices = @transform_3, window_bounds = array<i64: 256, 128>}]} {
    %c0 = arith.constant 0 : index
    %c0_0 = arith.constant 0 : index
    %0 = vector.load %arg1[%c0, %c0_0] : memref<256x128xf32, #tpu.memory_space<vmem>>, vector<256x128xf32>
    %c0_1 = arith.constant 0 : index
    %c0_2 = arith.constant 0 : index
    %1 = vector.load %arg2[%c0_1, %c0_2] : memref<1x128xf32, #tpu.memory_space<vmem>>, vector<1x128xf32>
    %2 = vector.broadcast %1 : vector<1x128xf32> to vector<256x128xf32>
    %3 = arith.mulf %0, %2 : vector<256x128xf32>
    %c0_3 = arith.constant 0 : index
    %c0_4 = arith.constant 0 : index
    %4 = vector.load %arg3[%c0_3, %c0_4] : memref<1x128xf32, #tpu.memory_space<vmem>>, vector<1x128xf32>
    %5 = vector.broadcast %4 : vector<1x128xf32> to vector<256x128xf32>
    %6 = arith.addf %3, %5 : vector<256x128xf32>
    %cst = arith.constant 0.000000e+00 : f32
    %7 = vector.broadcast %cst : f32 to vector<256x128xf32>
    %8 = arith.maximumf %6, %7 : vector<256x128xf32>
    %c0_5 = arith.constant 0 : index
    %c0_6 = arith.constant 0 : index
    %9 = vector.load %arg4[%c0_5, %c0_6] : memref<256x128xf32, #tpu.memory_space<vmem>>, vector<256x128xf32>
    tpu.vector_store %arg4[%c0_5, %c0_6], %8 {strides = array<i32>} : memref<256x128xf32, #tpu.memory_space<vmem>>, vector<256x128xf32>,
    return
  }
  func.func @transform_0(%arg0: i32) -> (i32, i32) {
    %c0_i32 = arith.constant 0 : i32
    %c0_i32_0 = arith.constant 0 : i32
    return %arg0, %c0_i32 : i32, i32
  }
  func.func @transform_1(%arg0: i32) -> (i32, i32) {
    %c0_i32 = arith.constant 0 : i32
    %c0_i32_0 = arith.constant 0 : i32
    %c0_i32_1 = arith.constant 0 : i32
    return %c0_i32, %c0_i32_0 : i32, i32
  }
  func.func @transform_2(%arg0: i32) -> (i32, i32) {
    %c0_i32 = arith.constant 0 : i32
    %c0_i32_0 = arith.constant 0 : i32
    %c0_i32_1 = arith.constant 0 : i32
    return %c0_i32, %c0_i32_0 : i32, i32
  }
  func.func @transform_3(%arg0: i32) -> (i32, i32) {
    %c0_i32 = arith.constant 0 : i32
    %c0_i32_0 = arith.constant 0 : i32
    return %arg0, %c0_i32 : i32, i32
  }
}

module attributes {stable_mosaic.version = 11 : i64} {
  func.func @conv_stats_kernel(%arg0: i32, %arg1: memref<256x36xbf16, #tpu.memory_space<vmem>>, %arg2: memref<36x128xbf16, #tpu.memory_space<vmem>>, %arg3: memref<256x128xf32, #tpu.memory_space<vmem>>, %arg4: memref<1x128xf32, #tpu.memory_space<vmem>>, %arg5: memref<1x128xf32, #tpu.memory_space<vmem>>) attributes {dimension_semantics = [#tpu.dimension_semantics<arbitrary>], iteration_bounds = array<i64: 2>, scalar_prefetch = 0 : i64, scratch_operands = 0 : i64, tpu.core_type = #tpu.core_type<tc>, window_params = [{transform_indices = @transform_0, window_bounds = array<i64: 256, 36>}, {pipeline_mode = #tpu.pipeline_mode<synchronous>, transform_indices = @transform_1, window_bounds = array<i64: 36, 128>}, {transform_indices = @transform_2, window_bounds = array<i64: 256, 128>}, {pipeline_mode = #tpu.pipeline_mode<synchronous>, transform_indices = @transform_3, window_bounds = array<i64: 1, 128>}, {pipeline_mode = #tpu.pipeline_mode<synchronous>, transform_indices = @transform_4, window_bounds = array<i64: 1, 128>}]} {
    %c0 = arith.constant 0 : index
    %c0_0 = arith.constant 0 : index
    %0 = vector.load %arg1[%c0, %c0_0] : memref<256x36xbf16, #tpu.memory_space<vmem>>, vector<256x36xbf16>
    %c0_1 = arith.constant 0 : index
    %c0_2 = arith.constant 0 : index
    %1 = vector.load %arg2[%c0_1, %c0_2] : memref<36x128xbf16, #tpu.memory_space<vmem>>, vector<36x128xbf16>
    %cst = arith.constant dense<0.000000e+00> : vector<256x128xf32>
    %2 = tpu.matmul %0, %1, %cst {dimension_numbers = #tpu.dot_dimension_numbers<[1], [0], [0], [1], [0, 0, 1, 1], [], []>} : vector<256x36xbf16>, vector<36x128xbf16>, vector<256x128xf32> -> vector<256x128xf32>
    %c0_3 = arith.constant 0 : index
    %c0_4 = arith.constant 0 : index
    %3 = vector.load %arg3[%c0_3, %c0_4] : memref<256x128xf32, #tpu.memory_space<vmem>>, vector<256x128xf32>
    tpu.vector_store %arg3[%c0_3, %c0_4], %2 {strides = array<i32>} : memref<256x128xf32, #tpu.memory_space<vmem>>, vector<256x128xf32>,
    %c0_i32 = arith.constant 0 : i32
    %4 = arith.cmpi eq, %arg0, %c0_i32 : i32
    %5 = arith.extui %4 : i1 to i32
    %c0_i32_5 = arith.constant 0 : i32
    %6 = arith.cmpi ne, %5, %c0_i32_5 : i32
    scf.if %6 {
      %cst_16 = arith.constant 0.000000e+00 : f32
      %18 = vector.broadcast %cst_16 : f32 to vector<1x128xf32>
      %c0_17 = arith.constant 0 : index
      %c0_18 = arith.constant 0 : index
      %19 = vector.load %arg4[%c0_17, %c0_18] : memref<1x128xf32, #tpu.memory_space<vmem>>, vector<1x128xf32>
      tpu.vector_store %arg4[%c0_17, %c0_18], %18 {strides = array<i32>} : memref<1x128xf32, #tpu.memory_space<vmem>>, vector<1x128xf32>,
      %cst_19 = arith.constant 0.000000e+00 : f32
      %20 = vector.broadcast %cst_19 : f32 to vector<1x128xf32>
      %c0_20 = arith.constant 0 : index
      %c0_21 = arith.constant 0 : index
      %21 = vector.load %arg5[%c0_20, %c0_21] : memref<1x128xf32, #tpu.memory_space<vmem>>, vector<1x128xf32>
      tpu.vector_store %arg5[%c0_20, %c0_21], %20 {strides = array<i32>} : memref<1x128xf32, #tpu.memory_space<vmem>>, vector<1x128xf32>,
    } else {
    }
    %c0_6 = arith.constant 0 : index
    %c0_7 = arith.constant 0 : index
    %7 = vector.load %arg4[%c0_6, %c0_7] : memref<1x128xf32, #tpu.memory_space<vmem>>, vector<1x128xf32>
    %cst_8 = arith.constant dense<0.000000e+00> : vector<128xf32>
    %8 = vector.multi_reduction <add>, %2, %cst_8 [0] : vector<256x128xf32> to vector<128xf32>
    %9 = vector.shape_cast %8 : vector<128xf32> to vector<1x128xf32>
    %10 = arith.addf %7, %9 : vector<1x128xf32>
    %c0_9 = arith.constant 0 : index
    %c0_10 = arith.constant 0 : index
    %11 = vector.load %arg4[%c0_9, %c0_10] : memref<1x128xf32, #tpu.memory_space<vmem>>, vector<1x128xf32>
    tpu.vector_store %arg4[%c0_9, %c0_10], %10 {strides = array<i32>} : memref<1x128xf32, #tpu.memory_space<vmem>>, vector<1x128xf32>,
    %c0_11 = arith.constant 0 : index
    %c0_12 = arith.constant 0 : index
    %12 = vector.load %arg5[%c0_11, %c0_12] : memref<1x128xf32, #tpu.memory_space<vmem>>, vector<1x128xf32>
    %13 = arith.mulf %2, %2 : vector<256x128xf32>
    %cst_13 = arith.constant dense<0.000000e+00> : vector<128xf32>
    %14 = vector.multi_reduction <add>, %13, %cst_13 [0] : vector<256x128xf32> to vector<128xf32>
    %15 = vector.shape_cast %14 : vector<128xf32> to vector<1x128xf32>
    %16 = arith.addf %12, %15 : vector<1x128xf32>
    %c0_14 = arith.constant 0 : index
    %c0_15 = arith.constant 0 : index
    %17 = vector.load %arg5[%c0_14, %c0_15] : memref<1x128xf32, #tpu.memory_space<vmem>>, vector<1x128xf32>
    tpu.vector_store %arg5[%c0_14, %c0_15], %16 {strides = array<i32>} : memref<1x128xf32, #tpu.memory_space<vmem>>, vector<1x128xf32>,
    return
  }
  func.func @transform_0(%arg0: i32) -> (i32, i32) {
    %c0_i32 = arith.constant 0 : i32
    %c0_i32_0 = arith.constant 0 : i32
    return %arg0, %c0_i32 : i32, i32
  }
  func.func @transform_1(%arg0: i32) -> (i32, i32) {
    %c0_i32 = arith.constant 0 : i32
    %c0_i32_0 = arith.constant 0 : i32
    %c0_i32_1 = arith.constant 0 : i32
    return %c0_i32, %c0_i32_0 : i32, i32
  }
  func.func @transform_2(%arg0: i32) -> (i32, i32) {
    %c0_i32 = arith.constant 0 : i32
    %c0_i32_0 = arith.constant 0 : i32
    return %arg0, %c0_i32 : i32, i32
  }
  func.func @transform_3(%arg0: i32) -> (i32, i32) {
    %c0_i32 = arith.constant 0 : i32
    %c0_i32_0 = arith.constant 0 : i32
    %c0_i32_1 = arith.constant 0 : i32
    return %c0_i32, %c0_i32_0 : i32, i32
  }
  func.func @transform_4(%arg0: i32) -> (i32, i32) {
    %c0_i32 = arith.constant 0 : i32
    %c0_i32_0 = arith.constant 0 : i32
    %c0_i32_1 = arith.constant 0 : i32
    return %c0_i32, %c0_i32_0 : i32, i32
  }
}

module attributes {stable_mosaic.version = 11 : i64} {
  func.func @conv_stats_kernel(%arg0: i32, %arg1: memref<256x100xbf16, #tpu.memory_space<vmem>>, %arg2: memref<100x128xbf16, #tpu.memory_space<vmem>>, %arg3: memref<256x128xf32, #tpu.memory_space<vmem>>, %arg4: memref<1x128xf32, #tpu.memory_space<vmem>>, %arg5: memref<1x128xf32, #tpu.memory_space<vmem>>) attributes {dimension_semantics = [#tpu.dimension_semantics<arbitrary>], iteration_bounds = array<i64: 2>, scalar_prefetch = 0 : i64, scratch_operands = 0 : i64, tpu.core_type = #tpu.core_type<tc>, window_params = [{transform_indices = @transform_0, window_bounds = array<i64: 256, 100>}, {pipeline_mode = #tpu.pipeline_mode<synchronous>, transform_indices = @transform_1, window_bounds = array<i64: 100, 128>}, {transform_indices = @transform_2, window_bounds = array<i64: 256, 128>}, {pipeline_mode = #tpu.pipeline_mode<synchronous>, transform_indices = @transform_3, window_bounds = array<i64: 1, 128>}, {pipeline_mode = #tpu.pipeline_mode<synchronous>, transform_indices = @transform_4, window_bounds = array<i64: 1, 128>}]} {
    %c0 = arith.constant 0 : index
    %c0_0 = arith.constant 0 : index
    %0 = vector.load %arg1[%c0, %c0_0] : memref<256x100xbf16, #tpu.memory_space<vmem>>, vector<256x100xbf16>
    %c0_1 = arith.constant 0 : index
    %c0_2 = arith.constant 0 : index
    %1 = vector.load %arg2[%c0_1, %c0_2] : memref<100x128xbf16, #tpu.memory_space<vmem>>, vector<100x128xbf16>
    %cst = arith.constant dense<0.000000e+00> : vector<256x128xf32>
    %2 = tpu.matmul %0, %1, %cst {dimension_numbers = #tpu.dot_dimension_numbers<[1], [0], [0], [1], [0, 0, 1, 1], [], []>} : vector<256x100xbf16>, vector<100x128xbf16>, vector<256x128xf32> -> vector<256x128xf32>
    %c0_3 = arith.constant 0 : index
    %c0_4 = arith.constant 0 : index
    %3 = vector.load %arg3[%c0_3, %c0_4] : memref<256x128xf32, #tpu.memory_space<vmem>>, vector<256x128xf32>
    tpu.vector_store %arg3[%c0_3, %c0_4], %2 {strides = array<i32>} : memref<256x128xf32, #tpu.memory_space<vmem>>, vector<256x128xf32>,
    %c0_i32 = arith.constant 0 : i32
    %4 = arith.cmpi eq, %arg0, %c0_i32 : i32
    %5 = arith.extui %4 : i1 to i32
    %c0_i32_5 = arith.constant 0 : i32
    %6 = arith.cmpi ne, %5, %c0_i32_5 : i32
    scf.if %6 {
      %cst_16 = arith.constant 0.000000e+00 : f32
      %18 = vector.broadcast %cst_16 : f32 to vector<1x128xf32>
      %c0_17 = arith.constant 0 : index
      %c0_18 = arith.constant 0 : index
      %19 = vector.load %arg4[%c0_17, %c0_18] : memref<1x128xf32, #tpu.memory_space<vmem>>, vector<1x128xf32>
      tpu.vector_store %arg4[%c0_17, %c0_18], %18 {strides = array<i32>} : memref<1x128xf32, #tpu.memory_space<vmem>>, vector<1x128xf32>,
      %cst_19 = arith.constant 0.000000e+00 : f32
      %20 = vector.broadcast %cst_19 : f32 to vector<1x128xf32>
      %c0_20 = arith.constant 0 : index
      %c0_21 = arith.constant 0 : index
      %21 = vector.load %arg5[%c0_20, %c0_21] : memref<1x128xf32, #tpu.memory_space<vmem>>, vector<1x128xf32>
      tpu.vector_store %arg5[%c0_20, %c0_21], %20 {strides = array<i32>} : memref<1x128xf32, #tpu.memory_space<vmem>>, vector<1x128xf32>,
    } else {
    }
    %c0_6 = arith.constant 0 : index
    %c0_7 = arith.constant 0 : index
    %7 = vector.load %arg4[%c0_6, %c0_7] : memref<1x128xf32, #tpu.memory_space<vmem>>, vector<1x128xf32>
    %cst_8 = arith.constant dense<0.000000e+00> : vector<128xf32>
    %8 = vector.multi_reduction <add>, %2, %cst_8 [0] : vector<256x128xf32> to vector<128xf32>
    %9 = vector.shape_cast %8 : vector<128xf32> to vector<1x128xf32>
    %10 = arith.addf %7, %9 : vector<1x128xf32>
    %c0_9 = arith.constant 0 : index
    %c0_10 = arith.constant 0 : index
    %11 = vector.load %arg4[%c0_9, %c0_10] : memref<1x128xf32, #tpu.memory_space<vmem>>, vector<1x128xf32>
    tpu.vector_store %arg4[%c0_9, %c0_10], %10 {strides = array<i32>} : memref<1x128xf32, #tpu.memory_space<vmem>>, vector<1x128xf32>,
    %c0_11 = arith.constant 0 : index
    %c0_12 = arith.constant 0 : index
    %12 = vector.load %arg5[%c0_11, %c0_12] : memref<1x128xf32, #tpu.memory_space<vmem>>, vector<1x128xf32>
    %13 = arith.mulf %2, %2 : vector<256x128xf32>
    %cst_13 = arith.constant dense<0.000000e+00> : vector<128xf32>
    %14 = vector.multi_reduction <add>, %13, %cst_13 [0] : vector<256x128xf32> to vector<128xf32>
    %15 = vector.shape_cast %14 : vector<128xf32> to vector<1x128xf32>
    %16 = arith.addf %12, %15 : vector<1x128xf32>
    %c0_14 = arith.constant 0 : index
    %c0_15 = arith.constant 0 : index
    %17 = vector.load %arg5[%c0_14, %c0_15] : memref<1x128xf32, #tpu.memory_space<vmem>>, vector<1x128xf32>
    tpu.vector_store %arg5[%c0_14, %c0_15], %16 {strides = array<i32>} : memref<1x128xf32, #tpu.memory_space<vmem>>, vector<1x128xf32>,
    return
  }
  func.func @transform_0(%arg0: i32) -> (i32, i32) {
    %c0_i32 = arith.constant 0 : i32
    %c0_i32_0 = arith.constant 0 : i32
    return %arg0, %c0_i32 : i32, i32
  }
  func.func @transform_1(%arg0: i32) -> (i32, i32) {
    %c0_i32 = arith.constant 0 : i32
    %c0_i32_0 = arith.constant 0 : i32
    %c0_i32_1 = arith.constant 0 : i32
    return %c0_i32, %c0_i32_0 : i32, i32
  }
  func.func @transform_2(%arg0: i32) -> (i32, i32) {
    %c0_i32 = arith.constant 0 : i32
    %c0_i32_0 = arith.constant 0 : i32
    return %arg0, %c0_i32 : i32, i32
  }
  func.func @transform_3(%arg0: i32) -> (i32, i32) {
    %c0_i32 = arith.constant 0 : i32
    %c0_i32_0 = arith.constant 0 : i32
    %c0_i32_1 = arith.constant 0 : i32
    return %c0_i32, %c0_i32_0 : i32, i32
  }
  func.func @transform_4(%arg0: i32) -> (i32, i32) {
    %c0_i32 = arith.constant 0 : i32
    %c0_i32_0 = arith.constant 0 : i32
    %c0_i32_1 = arith.constant 0 : i32
    return %c0_i32, %c0_i32_0 : i32, i32
  }
}

</mosaic_0001>

<llo_original>
// kernel: inception_block_forward.9
$region0: #{inception_block_forward.9}
  #allocation0 [shape = 'u32[]', space=smem, size = 0x4, offset = 0x4, fixed_abs, tag = 'smem constant byte address 0x4 - core index']
  #allocation1 [shape = 'u32[144,128]{1,0:T(1,128)}', space=vmem, size = 0x12000, scoped, tag = 'internal scratch']
  %s0 = inlined_call_operand.vmem [shape: f32[512,128], index: 0, kind: input, shape index: {}]
  %s1 = inlined_call_operand.vmem [shape: f32[1,128], index: 1, kind: input, shape index: {}]
  %s2 = inlined_call_operand.vmem [shape: f32[1,128], index: 2, kind: input, shape index: {}]
  %s3 = inlined_call_operand.vmem [shape: f32[512,128], index: 3, kind: output, shape index: {}]
  %s4 = sld [smem:[#allocation0]]
  $region45: #{inception_block_forward.9} parent=0
    _
  %s6 = ssub.s32 1, %s4
  %s7 = scalar_select 0, %s6, %s4
  loop: start=0, step=1, limit=4
  $region2: #{inception_block_forward.9} parent=0 // loop_pre_header
    _
  $region3: #{inception_block_forward.9} parent=0 // loop_header
    %s9 = sphi 0, %s13
    %p10 = scmp.ge.s32.totalorder %s9, 4
    %s19 = sphi 0, %s21
    %s22 = sphi 0, %s19
    %s23 = sphi 0, %s22
    %s39 = sphi 0, %s23
    %s43 = sphi 0, %s43
    %s45 = sphi 0, %s43
    %s46 = sphi 0, %s45
    %s60 = sphi 0, %s46
    %s64 = sphi 0, %s64
    %s66 = sphi 0, %s64
    %s67 = sphi 0, %s66
    %s81 = sphi 0, %s67
    %s87 = sphi 0, %s89
    %s90 = sphi 0, %s87
    %s91 = sphi 0, %s90
    %s107 = sphi 0, %s91
  $region4: #{inception_block_forward.9} parent=0 // loop_header_branch
    %12 = sbr.rel (%p10) target = $region8
  $region5: #{inception_block_forward.9} parent=0 // loop_body
    %s14 = ssub.s32 %s9, 1
    %s15 = ssub.s32 %s9, 2
    %s16 = sadd.s32 %s9, 1
    %s17 = ssub.s32 %s9, %s16
    %p18 = scmp.eq.s32.totalorder %s17, 0
    %s20 = sadd.s32 %s19, 1
    %s21 = scalar_select %p18, %s19, %s20
    %p24 = pneg %p18
    %p25 = scmp.eq.s32.totalorder %s9, 1
    %p26 = por %p24, %p25
    %p27 = scmp.ne.s32.totalorder %s19, %s22
    %p28 = scmp.eq.s32.totalorder %s9, 0
    %p29 = por %p27, %p28
    %p30 = scmp.ne.s32.totalorder %s19, %s22
    %p31 = scmp.eq.s32.totalorder %s14, 1
    %p32 = por %p30, %p31
    %p33 = scmp.ne.s32.totalorder %s22, %s23
    %p34 = scmp.eq.s32.totalorder %s14, 0
    %p35 = por %p33, %p34
    %p36 = scmp.ne.s32.totalorder %s22, %s23
    %p37 = scmp.eq.s32.totalorder %s15, 1
    %p38 = por %p36, %p37
    %p40 = scmp.ne.s32.totalorder %s23, %s39
    %p41 = scmp.eq.s32.totalorder %s15, 0
    %p42 = por %p40, %p41
    %s44 = sadd.s32 %s43, 1
    %p47 = scmp.eq.s32.totalorder %s9, 1
    %p48 = scmp.ne.s32.totalorder %s43, %s45
    %p49 = scmp.eq.s32.totalorder %s9, 0
    %p50 = por %p48, %p49
    %p51 = scmp.ne.s32.totalorder %s43, %s45
    %p52 = scmp.eq.s32.totalorder %s14, 1
    %p53 = por %p51, %p52
    %p54 = scmp.ne.s32.totalorder %s45, %s46
    %p55 = scmp.eq.s32.totalorder %s14, 0
    %p56 = por %p54, %p55
    %p57 = scmp.ne.s32.totalorder %s45, %s46
    %p58 = scmp.eq.s32.totalorder %s15, 1
    %p59 = por %p57, %p58
    %p61 = scmp.ne.s32.totalorder %s46, %s60
    %p62 = scmp.eq.s32.totalorder %s15, 0
    %p63 = por %p61, %p62
    %s65 = sadd.s32 %s64, 1
    %p68 = scmp.eq.s32.totalorder %s9, 1
    %p69 = scmp.ne.s32.totalorder %s64, %s66
    %p70 = scmp.eq.s32.totalorder %s9, 0
    %p71 = por %p69, %p70
    %p72 = scmp.ne.s32.totalorder %s64, %s66
    %p73 = scmp.eq.s32.totalorder %s14, 1
    %p74 = por %p72, %p73
    %p75 = scmp.ne.s32.totalorder %s66, %s67
    %p76 = scmp.eq.s32.totalorder %s14, 0
    %p77 = por %p75, %p76
    %p78 = scmp.ne.s32.totalorder %s66, %s67
    %p79 = scmp.eq.s32.totalorder %s15, 1
    %p80 = por %p78, %p79
    %p82 = scmp.ne.s32.totalorder %s67, %s81
    %p83 = scmp.eq.s32.totalorder %s15, 0
    %p84 = por %p82, %p83
    %s85 = ssub.s32 %s9, %s16
    %p86 = scmp.eq.s32.totalorder %s85, 0
    %s88 = sadd.s32 %s87, 1
    %s89 = scalar_select %p86, %s87, %s88
    %p92 = pneg %p86
    %p93 = scmp.eq.s32.totalorder %s9, 1
    %p94 = por %p92, %p93
    %p95 = scmp.ne.s32.totalorder %s87, %s90
    %p96 = scmp.eq.s32.totalorder %s9, 0
    %p97 = por %p95, %p96
    %p98 = scmp.ne.s32.totalorder %s87, %s90
    %p99 = scmp.eq.s32.totalorder %s14, 1
    %p100 = por %p98, %p99
    %p101 = scmp.ne.s32.totalorder %s90, %s91
    %p102 = scmp.eq.s32.totalorder %s14, 0
    %p103 = por %p101, %p102
    %p104 = scmp.ne.s32.totalorder %s90, %s91
    %p105 = scmp.eq.s32.totalorder %s15, 1
    %p106 = por %p104, %p105
    %p108 = scmp.ne.s32.totalorder %s91, %s107
    %p109 = scmp.eq.s32.totalorder %s15, 0
    %p110 = por %p108, %p109
    %p111 = scmp.le.s32.totalorder 1, %s9
    %p112 = scmp.lt.s32.totalorder %s9, 3
    %p113 = pnand %p111, %p112
    %p114 = pneg %p113
    // Predicated region
    $region9: #{inception_block_forward.9} parent=5 // pred_check
      _
    $region10: #{inception_block_forward.9} parent=5 // pred_check_branch
      %116 = sbr.rel (%p113) target = $region12
    $region11: #{inception_block_forward.9} parent=5 // pred_region
      %s117 = ssub.s32 %s9, 1
      // Predicated region
      $region13: #{inception_block_forward.9} parent=11 // pred_check
        %p118 = pneg %p56
      $region14: #{inception_block_forward.9} parent=11 // pred_check_branch
        %120 = sbr.rel (%p118) target = $region16
      $region15: #{inception_block_forward.9} parent=11 // pred_region
        _
      $region16: #{inception_block_forward.9} parent=11 // pred_fallthru
        _
      // Predicated region
      $region17: #{inception_block_forward.9} parent=11 // pred_check
        %p121 = pneg %p77
      $region18: #{inception_block_forward.9} parent=11 // pred_check_branch
        %123 = sbr.rel (%p121) target = $region20
      $region19: #{inception_block_forward.9} parent=11 // pred_region
        _
      $region20: #{inception_block_forward.9} parent=11 // pred_fallthru
        _
    $region12: #{inception_block_forward.9} parent=5 // pred_fallthru
      _
    %p124 = scmp.lt.s32.totalorder %s9, 2
    // Predicated region
    $region21: #{inception_block_forward.9} parent=5 // pred_check
      %p125 = pneg %p124
    $region22: #{inception_block_forward.9} parent=5 // pred_check_branch
      %127 = sbr.rel (%p125) target = $region24
    $region23: #{inception_block_forward.9} parent=5 // pred_region
      // Predicated region
      $region25: #{inception_block_forward.9} parent=23 // pred_check
        %p128 = pneg %p29
      $region26: #{inception_block_forward.9} parent=23 // pred_check_branch
        %130 = sbr.rel (%p128) target = $region28
      $region27: #{inception_block_forward.9} parent=23 // pred_region
        %s131 = smul.u32 32, %s9
        %p132 = scmp.lt.s32.totalorder %s131, 63
        %s133 = scalar_select %p132, %s131, 63
        %s134 = smul.addr %s133, 8
        %s135 = scalar_lea.vmem %s0, %s134
        %s136 = smul.u32 32, %s9
      $region28: #{inception_block_forward.9} parent=23 // pred_fallthru
        _
    $region24: #{inception_block_forward.9} parent=5 // pred_fallthru
      _
    %p137 = scmp.le.s32.totalorder 1, %s9
    %p138 = scmp.lt.s32.totalorder %s9, 3
    %p139 = pnand %p137, %p138
    %p140 = pneg %p139
    // Predicated region
    $region29: #{inception_block_forward.9} parent=5 // pred_check
      _
    $region30: #{inception_block_forward.9} parent=5 // pred_check_branch
      %142 = sbr.rel (%p139) target = $region32
    $region31: #{inception_block_forward.9} parent=5 // pred_region
      %s143 = ssub.s32 %s9, 1
      %s144 = smul.u32 32, %s14
      %p145 = scmp.lt.s32.totalorder %s144, 63
      %s146 = scalar_select %p145, %s144, 63
      %s147 = smul.addr %s146, 8
      %s148 = scalar_lea.vmem %s0, %s147
      %p149 = pneg %p35
      %p150 = pneg %p32
      %p151 = pneg %p56
      %p152 = pneg %p53
      %p153 = pneg %p77
      %p154 = pneg %p74
      %p155 = pneg %p103
      %p156 = pneg %p100
      %s157 = smul.u32 32, %s14
      %p158 = scmp.lt.s32.totalorder %s157, 63
      %s159 = scalar_select %p158, %s157, 63
      %s160 = smul.addr %s159, 8
      %s161 = scalar_lea.vmem %s3, %s160
      %s162 = smul.u32 32, %s14
      %p163 = scmp.lt.s32.totalorder %s162, 63
      %s164 = scalar_select %p163, %s162, 63
      %s165 = smul.addr %s164, 8
      %s166 = scalar_lea.vmem %s0, %s165
      %s167 = smul.u32 32, %s14
      %s168 = smul.u32 32, %s14
      %p169 = scmp.lt.s32.totalorder %s168, 63
      %s170 = scalar_select %p169, %s168, 63
      %s171 = smul.addr %s170, 8
      %s172 = scalar_lea.vmem %s3, %s171
      %s173 = smul.u32 32, %s14
      %v174 = vld [vmem:[%s166] sm:$0xff]
      %v175 = vld [vmem:[%s166 + $0x8] sm:$0xff]
      %v176 = vld [vmem:[%s166 + $0x10] sm:$0xff]
      %v177 = vld [vmem:[%s166 + $0x18] sm:$0xff]
      %v178 = vld [vmem:[%s166 + $0x20] sm:$0xff]
      %v179 = vld [vmem:[%s166 + $0x28] sm:$0xff]
      %v180 = vld [vmem:[%s166 + $0x30] sm:$0xff]
      %v181 = vld [vmem:[%s166 + $0x38] sm:$0xff]
      %v182 = vld [vmem:[%s166 + $0x40] sm:$0xff]
      %v183 = vld [vmem:[%s166 + $0x48] sm:$0xff]
      %v184 = vld [vmem:[%s166 + $0x50] sm:$0xff]
      %v185 = vld [vmem:[%s166 + $0x58] sm:$0xff]
      %v186 = vld [vmem:[%s166 + $0x60] sm:$0xff]
      %v187 = vld [vmem:[%s166 + $0x68] sm:$0xff]
      %v188 = vld [vmem:[%s166 + $0x70] sm:$0xff]
      %v189 = vld [vmem:[%s166 + $0x78] sm:$0xff]
      %v190 = vld [vmem:[%s166 + $0x80] sm:$0xff]
      %v191 = vld [vmem:[%s166 + $0x88] sm:$0xff]
      %v192 = vld [vmem:[%s166 + $0x90] sm:$0xff]
      %v193 = vld [vmem:[%s166 + $0x98] sm:$0xff]
      %v194 = vld [vmem:[%s166 + $0xa0] sm:$0xff]
      %v195 = vld [vmem:[%s166 + $0xa8] sm:$0xff]
      %v196 = vld [vmem:[%s166 + $0xb0] sm:$0xff]
      %v197 = vld [vmem:[%s166 + $0xb8] sm:$0xff]
      %v198 = vld [vmem:[%s166 + $0xc0] sm:$0xff]
      %v199 = vld [vmem:[%s166 + $0xc8] sm:$0xff]
      %v200 = vld [vmem:[%s166 + $0xd0] sm:$0xff]
      %v201 = vld [vmem:[%s166 + $0xd8] sm:$0xff]
      %v202 = vld [vmem:[%s166 + $0xe0] sm:$0xff]
      %v203 = vld [vmem:[%s166 + $0xe8] sm:$0xff]
      %v204 = vld [vmem:[%s166 + $0xf0] sm:$0xff]
      %v205 = vld [vmem:[%s166 + $0xf8] sm:$0xff]
      %v206 = vld [vmem:[%s1] sm:$0x1]
      %v208 = vlaneseq
      %v209 = vshrl.u32 %v208, 7
      %v210 = vsub.s32 0, %v209
      %v211 = vrot.slane %v206, %v210
      %v213 = vmul.f32 %v174, %v211
      %v214 = vmul.f32 %v175, %v211
      %v215 = vmul.f32 %v176, %v211
      %v216 = vmul.f32 %v177, %v211
      %v217 = vmul.f32 %v178, %v211
      %v218 = vmul.f32 %v179, %v211
      %v219 = vmul.f32 %v180, %v211
      %v220 = vmul.f32 %v181, %v211
      %v221 = vmul.f32 %v182, %v211
      %v222 = vmul.f32 %v183, %v211
      %v223 = vmul.f32 %v184, %v211
      %v224 = vmul.f32 %v185, %v211
      %v225 = vmul.f32 %v186, %v211
      %v226 = vmul.f32 %v187, %v211
      %v227 = vmul.f32 %v188, %v211
      %v228 = vmul.f32 %v189, %v211
      %v229 = vmul.f32 %v190, %v211
      %v230 = vmul.f32 %v191, %v211
      %v231 = vmul.f32 %v192, %v211
      %v232 = vmul.f32 %v193, %v211
      %v233 = vmul.f32 %v194, %v211
      %v234 = vmul.f32 %v195, %v211
      %v235 = vmul.f32 %v196, %v211
      %v236 = vmul.f32 %v197, %v211
      %v237 = vmul.f32 %v198, %v211
      %v238 = vmul.f32 %v199, %v211
      %v239 = vmul.f32 %v200, %v211
      %v240 = vmul.f32 %v201, %v211
      %v241 = vmul.f32 %v202, %v211
      %v242 = vmul.f32 %v203, %v211
      %v243 = vmul.f32 %v204, %v211
      %v244 = vmul.f32 %v205, %v211
      %v245 = vld [vmem:[%s2] sm:$0x1]
      %v247 = vlaneseq
      %v248 = vshrl.u32 %v247, 7
      %v249 = vsub.s32 0, %v248
      %v250 = vrot.slane %v245, %v249
      %v252 = vadd.f32 %v213, %v250
      %v253 = vadd.f32 %v214, %v250
      %v254 = vadd.f32 %v215, %v250
      %v255 = vadd.f32 %v216, %v250
      %v256 = vadd.f32 %v217, %v250
      %v257 = vadd.f32 %v218, %v250
      %v258 = vadd.f32 %v219, %v250
      %v259 = vadd.f32 %v220, %v250
      %v260 = vadd.f32 %v221, %v250
      %v261 = vadd.f32 %v222, %v250
      %v262 = vadd.f32 %v223, %v250
      %v263 = vadd.f32 %v224, %v250
      %v264 = vadd.f32 %v225, %v250
      %v265 = vadd.f32 %v226, %v250
      %v266 = vadd.f32 %v227, %v250
      %v267 = vadd.f32 %v228, %v250
      %v268 = vadd.f32 %v229, %v250
      %v269 = vadd.f32 %v230, %v250
      %v270 = vadd.f32 %v231, %v250
      %v271 = vadd.f32 %v232, %v250
      %v272 = vadd.f32 %v233, %v250
      %v273 = vadd.f32 %v234, %v250
      %v274 = vadd.f32 %v235, %v250
      %v275 = vadd.f32 %v236, %v250
      %v276 = vadd.f32 %v237, %v250
      %v277 = vadd.f32 %v238, %v250
      %v278 = vadd.f32 %v239, %v250
      %v279 = vadd.f32 %v240, %v250
      %v280 = vadd.f32 %v241, %v250
      %v281 = vadd.f32 %v242, %v250
      %v282 = vadd.f32 %v243, %v250
      %v283 = vadd.f32 %v244, %v250
      %v284 = vmax.f32 %v252, 0.0
      %v285 = vmax.f32 %v253, 0.0
      %v286 = vmax.f32 %v254, 0.0
      %v287 = vmax.f32 %v255, 0.0
      %v288 = vmax.f32 %v256, 0.0
      %v289 = vmax.f32 %v257, 0.0
      %v290 = vmax.f32 %v258, 0.0
      %v291 = vmax.f32 %v259, 0.0
      %v292 = vmax.f32 %v260, 0.0
      %v293 = vmax.f32 %v261, 0.0
      %v294 = vmax.f32 %v262, 0.0
      %v295 = vmax.f32 %v263, 0.0
      %v296 = vmax.f32 %v264, 0.0
      %v297 = vmax.f32 %v265, 0.0
      %v298 = vmax.f32 %v266, 0.0
      %v299 = vmax.f32 %v267, 0.0
      %v300 = vmax.f32 %v268, 0.0
      %v301 = vmax.f32 %v269, 0.0
      %v302 = vmax.f32 %v270, 0.0
      %v303 = vmax.f32 %v271, 0.0
      %v304 = vmax.f32 %v272, 0.0
      %v305 = vmax.f32 %v273, 0.0
      %v306 = vmax.f32 %v274, 0.0
      %v307 = vmax.f32 %v275, 0.0
      %v308 = vmax.f32 %v276, 0.0
      %v309 = vmax.f32 %v277, 0.0
      %v310 = vmax.f32 %v278, 0.0
      %v311 = vmax.f32 %v279, 0.0
      %v312 = vmax.f32 %v280, 0.0
      %v313 = vmax.f32 %v281, 0.0
      %v314 = vmax.f32 %v282, 0.0
      %v315 = vmax.f32 %v283, 0.0
      %316 = vst [vmem:[%s172] sm:$0xff] %v284
      %317 = vst [vmem:[%s172 + $0x8] sm:$0xff] %v285
      %318 = vst [vmem:[%s172 + $0x10] sm:$0xff] %v286
      %319 = vst [vmem:[%s172 + $0x18] sm:$0xff] %v287
      %320 = vst [vmem:[%s172 + $0x20] sm:$0xff] %v288
      %321 = vst [vmem:[%s172 + $0x28] sm:$0xff] %v289
      %322 = vst [vmem:[%s172 + $0x30] sm:$0xff] %v290
      %323 = vst [vmem:[%s172 + $0x38] sm:$0xff] %v291
      %324 = vst [vmem:[%s172 + $0x40] sm:$0xff] %v292
      %325 = vst [vmem:[%s172 + $0x48] sm:$0xff] %v293
      %326 = vst [vmem:[%s172 + $0x50] sm:$0xff] %v294
      %327 = vst [vmem:[%s172 + $0x58] sm:$0xff] %v295
      %328 = vst [vmem:[%s172 + $0x60] sm:$0xff] %v296
      %329 = vst [vmem:[%s172 + $0x68] sm:$0xff] %v297
      %330 = vst [vmem:[%s172 + $0x70] sm:$0xff] %v298
      %331 = vst [vmem:[%s172 + $0x78] sm:$0xff] %v299
      %332 = vst [vmem:[%s172 + $0x80] sm:$0xff] %v300
      %333 = vst [vmem:[%s172 + $0x88] sm:$0xff] %v301
      %334 = vst [vmem:[%s172 + $0x90] sm:$0xff] %v302
      %335 = vst [vmem:[%s172 + $0x98] sm:$0xff] %v303
      %336 = vst [vmem:[%s172 + $0xa0] sm:$0xff] %v304
      %337 = vst [vmem:[%s172 + $0xa8] sm:$0xff] %v305
      %338 = vst [vmem:[%s172 + $0xb0] sm:$0xff] %v306
      %339 = vst [vmem:[%s172 + $0xb8] sm:$0xff] %v307
      %340 = vst [vmem:[%s172 + $0xc0] sm:$0xff] %v308
      %341 = vst [vmem:[%s172 + $0xc8] sm:$0xff] %v309
      %342 = vst [vmem:[%s172 + $0xd0] sm:$0xff] %v310
      %343 = vst [vmem:[%s172 + $0xd8] sm:$0xff] %v311
      %344 = vst [vmem:[%s172 + $0xe0] sm:$0xff] %v312
      %345 = vst [vmem:[%s172 + $0xe8] sm:$0xff] %v313
      %346 = vst [vmem:[%s172 + $0xf0] sm:$0xff] %v314
      %347 = vst [vmem:[%s172 + $0xf8] sm:$0xff] %v315
      %s348 = smul.u32 32, %s14
      %p349 = scmp.lt.s32.totalorder %s348, 63
      %s350 = scalar_select %p349, %s348, 63
      %s351 = smul.addr %s350, 8
      %s352 = scalar_lea.vmem %s3, %s351
      // Predicated region
      $region33: #{inception_block_forward.9} parent=31 // pred_check
        %p353 = pneg %p100
      $region34: #{inception_block_forward.9} parent=31 // pred_check_branch
        %355 = sbr.rel (%p353) target = $region36
      $region35: #{inception_block_forward.9} parent=31 // pred_region
        %s356 = smul.u32 32, %s14
      $region36: #{inception_block_forward.9} parent=31 // pred_fallthru
        _
    $region32: #{inception_block_forward.9} parent=5 // pred_fallthru
      _
    %p357 = scmp.le.s32.totalorder 2, %s9
    // Predicated region
    $region37: #{inception_block_forward.9} parent=5 // pred_check
      %p358 = pneg %p357
    $region38: #{inception_block_forward.9} parent=5 // pred_check_branch
      %360 = sbr.rel (%p358) target = $region40
    $region39: #{inception_block_forward.9} parent=5 // pred_region
      %s361 = ssub.s32 %s9, 2
      // Predicated region
      $region41: #{inception_block_forward.9} parent=39 // pred_check
        %p362 = pneg %p106
      $region42: #{inception_block_forward.9} parent=39 // pred_check_branch
        %364 = sbr.rel (%p362) target = $region44
      $region43: #{inception_block_forward.9} parent=39 // pred_region
        %s365 = smul.u32 32, %s15
        %p366 = scmp.lt.s32.totalorder %s365, 63
        %s367 = scalar_select %p366, %s365, 63
        %s368 = smul.addr %s367, 8
        %s369 = scalar_lea.vmem %s3, %s368
      $region44: #{inception_block_forward.9} parent=39 // pred_fallthru
        _
    $region40: #{inception_block_forward.9} parent=5 // pred_fallthru
      _
  $region6: #{inception_block_forward.9} parent=0 // loop_footer
    %s13 = sadd.s32 1, %s9
  $region7: #{inception_block_forward.9} parent=0 // loop_footer_branch
    %8 = sbr.rel target = $region3
  $region8: #{inception_block_forward.9} parent=0 // loop_exit
    _

// kernel: inception_block_forward.8
$region0: #{inception_block_forward.8}
  #allocation0 [shape = 'u32[]', space=smem, size = 0x4, offset = 0x4, fixed_abs, tag = 'smem constant byte address 0x4 - core index']
  #allocation1 [shape = 'u32[144,128]{1,0:T(1,128)}', space=vmem, size = 0x12000, scoped, tag = 'internal scratch']
  %s0 = inlined_call_operand.vmem [shape: bf16[512,4], index: 0, kind: input, shape index: {}]
  %s1 = inlined_call_operand.vmem [shape: bf16[4,128], index: 1, kind: input, shape index: {}]
  %s2 = inlined_call_operand.vmem [shape: f32[512,128], index: 2, kind: output, shape index: {0}]
  %s3 = inlined_call_operand.vmem [shape: f32[1,128], index: 3, kind: output, shape index: {1}]
  %s4 = inlined_call_operand.vmem [shape: f32[1,128], index: 4, kind: output, shape index: {2}]
  %5 = xla_tuple %s2, %s3, %s4
  %s6 = sld [smem:[#allocation0]]
  $region61: #{inception_block_forward.8} parent=0
    _
  %s8 = ssub.s32 1, %s6
  %s9 = scalar_select 0, %s8, %s6
  loop: start=0, step=1, limit=4
  $region2: #{inception_block_forward.8} parent=0 // loop_pre_header
    _
  $region3: #{inception_block_forward.8} parent=0 // loop_header
    %s11 = sphi 0, %s15
    %p12 = scmp.ge.s32.totalorder %s11, 4
    %s21 = sphi 0, %s23
    %s24 = sphi 0, %s21
    %s25 = sphi 0, %s24
    %s41 = sphi 0, %s25
    %s45 = sphi 0, %s45
    %s47 = sphi 0, %s45
    %s48 = sphi 0, %s47
    %s62 = sphi 0, %s48
    %s68 = sphi 0, %s70
    %s71 = sphi 0, %s68
    %s72 = sphi 0, %s71
    %s88 = sphi 0, %s72
    %s92 = sphi 0, %s92
    %s94 = sphi 0, %s92
    %s95 = sphi 0, %s94
    %s109 = sphi 0, %s95
    %s113 = sphi 0, %s113
    %s115 = sphi 0, %s113
    %s116 = sphi 0, %s115
    %s130 = sphi 0, %s116
  $region4: #{inception_block_forward.8} parent=0 // loop_header_branch
    %14 = sbr.rel (%p12) target = $region8
  $region5: #{inception_block_forward.8} parent=0 // loop_body
    %s16 = ssub.s32 %s11, 1
    %s17 = ssub.s32 %s11, 2
    %s18 = sadd.s32 %s11, 1
    %s19 = ssub.s32 %s11, %s18
    %p20 = scmp.eq.s32.totalorder %s19, 0
    %s22 = sadd.s32 %s21, 1
    %s23 = scalar_select %p20, %s21, %s22
    %p26 = pneg %p20
    %p27 = scmp.eq.s32.totalorder %s11, 1
    %p28 = por %p26, %p27
    %p29 = scmp.ne.s32.totalorder %s21, %s24
    %p30 = scmp.eq.s32.totalorder %s11, 0
    %p31 = por %p29, %p30
    %p32 = scmp.ne.s32.totalorder %s21, %s24
    %p33 = scmp.eq.s32.totalorder %s16, 1
    %p34 = por %p32, %p33
    %p35 = scmp.ne.s32.totalorder %s24, %s25
    %p36 = scmp.eq.s32.totalorder %s16, 0
    %p37 = por %p35, %p36
    %p38 = scmp.ne.s32.totalorder %s24, %s25
    %p39 = scmp.eq.s32.totalorder %s17, 1
    %p40 = por %p38, %p39
    %p42 = scmp.ne.s32.totalorder %s25, %s41
    %p43 = scmp.eq.s32.totalorder %s17, 0
    %p44 = por %p42, %p43
    %s46 = sadd.s32 %s45, 1
    %p49 = scmp.eq.s32.totalorder %s11, 1
    %p50 = scmp.ne.s32.totalorder %s45, %s47
    %p51 = scmp.eq.s32.totalorder %s11, 0
    %p52 = por %p50, %p51
    %p53 = scmp.ne.s32.totalorder %s45, %s47
    %p54 = scmp.eq.s32.totalorder %s16, 1
    %p55 = por %p53, %p54
    %p56 = scmp.ne.s32.totalorder %s47, %s48
    %p57 = scmp.eq.s32.totalorder %s16, 0
    %p58 = por %p56, %p57
    %p59 = scmp.ne.s32.totalorder %s47, %s48
    %p60 = scmp.eq.s32.totalorder %s17, 1
    %p61 = por %p59, %p60
    %p63 = scmp.ne.s32.totalorder %s48, %s62
    %p64 = scmp.eq.s32.totalorder %s17, 0
    %p65 = por %p63, %p64
    %s66 = ssub.s32 %s11, %s18
    %p67 = scmp.eq.s32.totalorder %s66, 0
    %s69 = sadd.s32 %s68, 1
    %s70 = scalar_select %p67, %s68, %s69
    %p73 = pneg %p67
    %p74 = scmp.eq.s32.totalorder %s11, 1
    %p75 = por %p73, %p74
    %p76 = scmp.ne.s32.totalorder %s68, %s71
    %p77 = scmp.eq.s32.totalorder %s11, 0
    %p78 = por %p76, %p77
    %p79 = scmp.ne.s32.totalorder %s68, %s71
    %p80 = scmp.eq.s32.totalorder %s16, 1
    %p81 = por %p79, %p80
    %p82 = scmp.ne.s32.totalorder %s71, %s72
    %p83 = scmp.eq.s32.totalorder %s16, 0
    %p84 = por %p82, %p83
    %p85 = scmp.ne.s32.totalorder %s71, %s72
    %p86 = scmp.eq.s32.totalorder %s17, 1
    %p87 = por %p85, %p86
    %p89 = scmp.ne.s32.totalorder %s72, %s88
    %p90 = scmp.eq.s32.totalorder %s17, 0
    %p91 = por %p89, %p90
    %s93 = sadd.s32 %s92, 1
    %p96 = scmp.eq.s32.totalorder %s11, 1
    %p97 = scmp.ne.s32.totalorder %s92, %s94
    %p98 = scmp.eq.s32.totalorder %s11, 0
    %p99 = por %p97, %p98
    %p100 = scmp.ne.s32.totalorder %s92, %s94
    %p101 = scmp.eq.s32.totalorder %s16, 1
    %p102 = por %p100, %p101
    %p103 = scmp.ne.s32.totalorder %s94, %s95
    %p104 = scmp.eq.s32.totalorder %s16, 0
    %p105 = por %p103, %p104
    %p106 = scmp.ne.s32.totalorder %s94, %s95
    %p107 = scmp.eq.s32.totalorder %s17, 1
    %p108 = por %p106, %p107
    %p110 = scmp.ne.s32.totalorder %s95, %s109
    %p111 = scmp.eq.s32.totalorder %s17, 0
    %p112 = por %p110, %p111
    %s114 = sadd.s32 %s113, 1
    %p117 = scmp.eq.s32.totalorder %s11, 1
    %p118 = scmp.ne.s32.totalorder %s113, %s115
    %p119 = scmp.eq.s32.totalorder %s11, 0
    %p120 = por %p118, %p119
    %p121 = scmp.ne.s32.totalorder %s113, %s115
    %p122 = scmp.eq.s32.totalorder %s16, 1
    %p123 = por %p121, %p122
    %p124 = scmp.ne.s32.totalorder %s115, %s116
    %p125 = scmp.eq.s32.totalorder %s16, 0
    %p126 = por %p124, %p125
    %p127 = scmp.ne.s32.totalorder %s115, %s116
    %p128 = scmp.eq.s32.totalorder %s17, 1
    %p129 = por %p127, %p128
    %p131 = scmp.ne.s32.totalorder %s116, %s130
    %p132 = scmp.eq.s32.totalorder %s17, 0
    %p133 = por %p131, %p132
    %p134 = scmp.le.s32.totalorder 1, %s11
    %p135 = scmp.lt.s32.totalorder %s11, 3
    %p136 = pnand %p134, %p135
    %p137 = pneg %p136
    // Predicated region
    $region9: #{inception_block_forward.8} parent=5 // pred_check
      _
    $region10: #{inception_block_forward.8} parent=5 // pred_check_branch
      %139 = sbr.rel (%p136) target = $region12
    $region11: #{inception_block_forward.8} parent=5 // pred_region
      %s140 = ssub.s32 %s11, 1
      // Predicated region
      $region13: #{inception_block_forward.8} parent=11 // pred_check
        %p141 = pneg %p58
      $region14: #{inception_block_forward.8} parent=11 // pred_check_branch
        %143 = sbr.rel (%p141) target = $region16
      $region15: #{inception_block_forward.8} parent=11 // pred_region
        _
      $region16: #{inception_block_forward.8} parent=11 // pred_fallthru
        _
    $region12: #{inception_block_forward.8} parent=5 // pred_fallthru
      _
    %p144 = scmp.lt.s32.totalorder %s11, 2
    // Predicated region
    $region17: #{inception_block_forward.8} parent=5 // pred_check
      %p145 = pneg %p144
    $region18: #{inception_block_forward.8} parent=5 // pred_check_branch
      %147 = sbr.rel (%p145) target = $region20
    $region19: #{inception_block_forward.8} parent=5 // pred_region
      // Predicated region
      $region21: #{inception_block_forward.8} parent=19 // pred_check
        %p148 = pneg %p31
      $region22: #{inception_block_forward.8} parent=19 // pred_check_branch
        %150 = sbr.rel (%p148) target = $region24
      $region23: #{inception_block_forward.8} parent=19 // pred_region
        %s151 = smul.u32 32, %s11
        %p152 = scmp.lt.s32.totalorder %s151, 63
        %s153 = scalar_select %p152, %s151, 63
        %s154 = smul.addr %s153, 4
        %s155 = scalar_lea.vmem %s0, %s154
        %s156 = smul.u32 32, %s11
      $region24: #{inception_block_forward.8} parent=19 // pred_fallthru
        _
    $region20: #{inception_block_forward.8} parent=5 // pred_fallthru
      _
    %p157 = scmp.le.s32.totalorder 1, %s11
    %p158 = scmp.lt.s32.totalorder %s11, 3
    %p159 = pnand %p157, %p158
    %p160 = pneg %p159
    // Predicated region
    $region25: #{inception_block_forward.8} parent=5 // pred_check
      _
    $region26: #{inception_block_forward.8} parent=5 // pred_check_branch
      %162 = sbr.rel (%p159) target = $region28
    $region27: #{inception_block_forward.8} parent=5 // pred_region
      %s163 = ssub.s32 %s11, 1
      %s164 = smul.u32 32, %s16
      %p165 = scmp.lt.s32.totalorder %s164, 63
      %s166 = scalar_select %p165, %s164, 63
      %s167 = smul.addr %s166, 4
      %s168 = scalar_lea.vmem %s0, %s167
      %p169 = pneg %p37
      %p170 = pneg %p34
      %p171 = pneg %p58
      %p172 = pneg %p55
      %p173 = pneg %p84
      %p174 = pneg %p81
      %s175 = smul.u32 32, %s16
      %p176 = scmp.lt.s32.totalorder %s175, 63
      %s177 = scalar_select %p176, %s175, 63
      %s178 = smul.addr %s177, 8
      %s179 = scalar_lea.vmem %s2, %s178
      %p180 = pneg %p105
      %p181 = pneg %p102
      %p182 = pneg %p126
      %p183 = pneg %p123
      %s184 = smul.u32 32, %s16
      %p185 = scmp.lt.s32.totalorder %s184, 63
      %s186 = scalar_select %p185, %s184, 63
      %s187 = smul.addr %s186, 4
      %s188 = scalar_lea.vmem %s0, %s187
      %s189 = smul.u32 32, %s16
      %s190 = smul.u32 32, %s16
      %p191 = scmp.lt.s32.totalorder %s190, 63
      %s192 = scalar_select %p191, %s190, 63
      %s193 = smul.addr %s192, 8
      %s194 = scalar_lea.vmem %s2, %s193
      %s195 = smul.u32 32, %s16
      %v197 = vld [vmem:[%s188] sm:$0xf]
      %v198 = vld [vmem:[%s188 + $0x4] sm:$0xf]
      %v199 = vld [vmem:[%s188 + $0x8] sm:$0xf]
      %v200 = vld [vmem:[%s188 + $0xc] sm:$0xf]
      %v201 = vld [vmem:[%s188 + $0x10] sm:$0xf]
      %v202 = vld [vmem:[%s188 + $0x14] sm:$0xf]
      %v203 = vld [vmem:[%s188 + $0x18] sm:$0xf]
      %v204 = vld [vmem:[%s188 + $0x1c] sm:$0xf]
      %v205 = vld [vmem:[%s188 + $0x20] sm:$0xf]
      %v206 = vld [vmem:[%s188 + $0x24] sm:$0xf]
      %v207 = vld [vmem:[%s188 + $0x28] sm:$0xf]
      %v208 = vld [vmem:[%s188 + $0x2c] sm:$0xf]
      %v209 = vld [vmem:[%s188 + $0x30] sm:$0xf]
      %v210 = vld [vmem:[%s188 + $0x34] sm:$0xf]
      %v211 = vld [vmem:[%s188 + $0x38] sm:$0xf]
      %v212 = vld [vmem:[%s188 + $0x3c] sm:$0xf]
      %v213 = vld [vmem:[%s188 + $0x40] sm:$0xf]
      %v214 = vld [vmem:[%s188 + $0x44] sm:$0xf]
      %v215 = vld [vmem:[%s188 + $0x48] sm:$0xf]
      %v216 = vld [vmem:[%s188 + $0x4c] sm:$0xf]
      %v217 = vld [vmem:[%s188 + $0x50] sm:$0xf]
      %v218 = vld [vmem:[%s188 + $0x54] sm:$0xf]
      %v219 = vld [vmem:[%s188 + $0x58] sm:$0xf]
      %v220 = vld [vmem:[%s188 + $0x5c] sm:$0xf]
      %v221 = vld [vmem:[%s188 + $0x60] sm:$0xf]
      %v222 = vld [vmem:[%s188 + $0x64] sm:$0xf]
      %v223 = vld [vmem:[%s188 + $0x68] sm:$0xf]
      %v224 = vld [vmem:[%s188 + $0x6c] sm:$0xf]
      %v225 = vld [vmem:[%s188 + $0x70] sm:$0xf]
      %v226 = vld [vmem:[%s188 + $0x74] sm:$0xf]
      %v227 = vld [vmem:[%s188 + $0x78] sm:$0xf]
      %v228 = vld [vmem:[%s188 + $0x7c] sm:$0xf]
      %v229 = vld [vmem:[%s1] sm:$0x3]
      %v262 = vunpack.c.l.b16 %v197
      %v263 = vunpack.c.l.b16 %v198
      %v264 = vunpack.c.l.b16 %v199
      %v265 = vunpack.c.l.b16 %v200
      %v266 = vunpack.c.l.b16 %v201
      %v267 = vunpack.c.l.b16 %v202
      %v268 = vunpack.c.l.b16 %v203
      %v269 = vunpack.c.l.b16 %v204
      %v270 = vunpack.c.l.b16 %v205
      %v271 = vunpack.c.l.b16 %v206
      %v272 = vunpack.c.l.b16 %v207
      %v273 = vunpack.c.l.b16 %v208
      %v274 = vunpack.c.l.b16 %v209
      %v275 = vunpack.c.l.b16 %v210
      %v276 = vunpack.c.l.b16 %v211
      %v277 = vunpack.c.l.b16 %v212
      %v278 = vunpack.c.l.b16 %v213
      %v279 = vunpack.c.l.b16 %v214
      %v280 = vunpack.c.l.b16 %v215
      %v281 = vunpack.c.l.b16 %v216
      %v282 = vunpack.c.l.b16 %v217
      %v283 = vunpack.c.l.b16 %v218
      %v284 = vunpack.c.l.b16 %v219
      %v285 = vunpack.c.l.b16 %v220
      %v286 = vunpack.c.l.b16 %v221
      %v287 = vunpack.c.l.b16 %v222
      %v288 = vunpack.c.l.b16 %v223
      %v289 = vunpack.c.l.b16 %v224
      %v290 = vunpack.c.l.b16 %v225
      %v291 = vunpack.c.l.b16 %v226
      %v292 = vunpack.c.l.b16 %v227
      %v293 = vunpack.c.l.b16 %v228
      %v294 = vpack.c.b16 %v263, %v262
      %v295 = vpack.c.b16 %v265, %v264
      %v296 = vpack.c.b16 %v267, %v266
      %v297 = vpack.c.b16 %v269, %v268
      %v298 = vpack.c.b16 %v271, %v270
      %v299 = vpack.c.b16 %v273, %v272
      %v300 = vpack.c.b16 %v275, %v274
      %v301 = vpack.c.b16 %v277, %v276
      %v302 = vpack.c.b16 %v279, %v278
      %v303 = vpack.c.b16 %v281, %v280
      %v304 = vpack.c.b16 %v283, %v282
      %v305 = vpack.c.b16 %v285, %v284
      %v306 = vpack.c.b16 %v287, %v286
      %v307 = vpack.c.b16 %v289, %v288
      %v308 = vpack.c.b16 %v291, %v290
      %v309 = vpack.c.b16 %v293, %v292
      %vm310 = vcmask 31744
      %v312 = vsel %vm310, %v294, 0
      %v315 = vsel %vm310, %v295, 0
      %v318 = vsel %vm310, %v296, 0
      %v321 = vsel %vm310, %v297, 0
      %v324 = vsel %vm310, %v298, 0
      %v327 = vsel %vm310, %v299, 0
      %v330 = vsel %vm310, %v300, 0
      %v333 = vsel %vm310, %v301, 0
      %v336 = vsel %vm310, %v302, 0
      %v339 = vsel %vm310, %v303, 0
      %v342 = vsel %vm310, %v304, 0
      %v345 = vsel %vm310, %v305, 0
      %v348 = vsel %vm310, %v306, 0
      %v351 = vsel %vm310, %v307, 0
      %v354 = vsel %vm310, %v308, 0
      %v357 = vsel %vm310, %v309, 0
      %vm359 = vcmask 1041408
      %v361 = vsel %vm359, %v229, 0
      %363 = vmatprep.subr.bf16.mxu0 0
      %364 = vmatpush1.bf16.msra.mxu0 %v361
      %365 = vmatprep.subr.bf16.mxu0 0
      %366 = vmatpush1.bf16.msra.mxu0 0
      %367 = vmatprep.subr.bf16.mxu0 0
      %368 = vmatpush1.bf16.msra.mxu0 0
      %369 = vmatprep.subr.bf16.mxu0 0
      %370 = vmatpush1.bf16.msra.mxu0 0
      %371 = vmatprep.subr.bf16.mxu0 0
      %372 = vmatpush1.bf16.msra.mxu0 0
      %373 = vmatprep.subr.bf16.mxu0 0
      %374 = vmatpush1.bf16.msra.mxu0 0
      %375 = vmatprep.subr.bf16.mxu0 0
      %376 = vmatpush1.bf16.msra.mxu0 0
      %377 = vmatprep.subr.bf16.mxu0 0
      %378 = vmatpush1.bf16.msra.mxu0 0
      %379 = vmatprep.subr.bf16.mxu0 0
      %380 = vmatpush1.bf16.msra.mxu0 0
      %381 = vmatprep.subr.bf16.mxu0 0
      %382 = vmatpush1.bf16.msra.mxu0 0
      %383 = vmatprep.subr.bf16.mxu0 0
      %384 = vmatpush1.bf16.msra.mxu0 0
      %385 = vmatprep.subr.bf16.mxu0 0
      %386 = vmatpush1.bf16.msra.mxu0 0
      %387 = vmatprep.subr.bf16.mxu0 0
      %388 = vmatpush1.bf16.msra.mxu0 0
      %389 = vmatprep.subr.bf16.mxu0 0
      %390 = vmatpush1.bf16.msra.mxu0 0
      %391 = vmatprep.subr.bf16.mxu0 0
      %392 = vmatpush1.bf16.msra.mxu0 0
      %393 = vmatprep.subr.bf16.mxu0 0
      %394 = vmatpush1.bf16.msra.mxu0 0
      %395 = vmatprep.mubr.bf16.mxu0 0
      %396 = vmatmul.mubr.bf16.gmra.mrb[0].mxu0 %v312
      %v397 = vpop.f32.mrb[0].mxu0
      %v398 = vadd.f32 0.0, %v397
      %v399 = vpop.f32.mrb[0].mxu0
      %v400 = vpop.f32.mrb[0].mxu0
      %v401 = vadd.f32 0.0, %v400
      %v402 = vpop.f32.mrb[0].mxu0
      %403 = vmatprep.mubr.bf16.mxu0 0
      %404 = vmatmul.mubr.bf16.gmra.mrb[0].mxu0 %v315
      %v405 = vpop.f32.mrb[0].mxu0
      %v406 = vadd.f32 0.0, %v405
      %v407 = vpop.f32.mrb[0].mxu0
      %v408 = vpop.f32.mrb[0].mxu0
      %v409 = vadd.f32 0.0, %v408
      %v410 = vpop.f32.mrb[0].mxu0
      %411 = vmatprep.mubr.bf16.mxu0 0
      %412 = vmatmul.mubr.bf16.gmra.mrb[0].mxu0 %v318
      %v413 = vpop.f32.mrb[0].mxu0
      %v414 = vadd.f32 0.0, %v413
      %v415 = vpop.f32.mrb[0].mxu0
      %v416 = vpop.f32.mrb[0].mxu0
      %v417 = vadd.f32 0.0, %v416
      %v418 = vpop.f32.mrb[0].mxu0
      %419 = vmatprep.mubr.bf16.mxu0 0
      %420 = vmatmul.mubr.bf16.gmra.mrb[0].mxu0 %v321
      %v421 = vpop.f32.mrb[0].mxu0
      %v422 = vadd.f32 0.0, %v421
      %v423 = vpop.f32.mrb[0].mxu0
      %v424 = vpop.f32.mrb[0].mxu0
      %v425 = vadd.f32 0.0, %v424
      %v426 = vpop.f32.mrb[0].mxu0
      %427 = vmatprep.mubr.bf16.mxu0 0
      %428 = vmatmul.mubr.bf16.gmra.mrb[0].mxu0 %v324
      %v429 = vpop.f32.mrb[0].mxu0
      %v430 = vadd.f32 0.0, %v429
      %v431 = vpop.f32.mrb[0].mxu0
      %v432 = vpop.f32.mrb[0].mxu0
      %v433 = vadd.f32 0.0, %v432
      %v434 = vpop.f32.mrb[0].mxu0
      %435 = vmatprep.mubr.bf16.mxu0 0
      %436 = vmatmul.mubr.bf16.gmra.mrb[0].mxu0 %v327
      %v437 = vpop.f32.mrb[0].mxu0
      %v438 = vadd.f32 0.0, %v437
      %v439 = vpop.f32.mrb[0].mxu0
      %v440 = vpop.f32.mrb[0].mxu0
      %v441 = vadd.f32 0.0, %v440
      %v442 = vpop.f32.mrb[0].mxu0
      %443 = vmatprep.mubr.bf16.mxu0 0
      %444 = vmatmul.mubr.bf16.gmra.mrb[0].mxu0 %v330
      %v445 = vpop.f32.mrb[0].mxu0
      %v446 = vadd.f32 0.0, %v445
      %v447 = vpop.f32.mrb[0].mxu0
      %v448 = vpop.f32.mrb[0].mxu0
      %v449 = vadd.f32 0.0, %v448
      %v450 = vpop.f32.mrb[0].mxu0
      %451 = vmatprep.mubr.bf16.mxu0 0
      %452 = vmatmul.mubr.bf16.gmra.mrb[0].mxu0 %v333
      %v453 = vpop.f32.mrb[0].mxu0
      %v454 = vadd.f32 0.0, %v453
      %v455 = vpop.f32.mrb[0].mxu0
      %v456 = vpop.f32.mrb[0].mxu0
      %v457 = vadd.f32 0.0, %v456
      %v458 = vpop.f32.mrb[0].mxu0
      %459 = vmatprep.mubr.bf16.mxu0 0
      %460 = vmatmul.mubr.bf16.gmra.mrb[0].mxu0 %v336
      %v461 = vpop.f32.mrb[0].mxu0
      %v462 = vadd.f32 0.0, %v461
      %v463 = vpop.f32.mrb[0].mxu0
      %v464 = vpop.f32.mrb[0].mxu0
      %v465 = vadd.f32 0.0, %v464
      %v466 = vpop.f32.mrb[0].mxu0
      %467 = vmatprep.mubr.bf16.mxu0 0
      %468 = vmatmul.mubr.bf16.gmra.mrb[0].mxu0 %v339
      %v469 = vpop.f32.mrb[0].mxu0
      %v470 = vadd.f32 0.0, %v469
      %v471 = vpop.f32.mrb[0].mxu0
      %v472 = vpop.f32.mrb[0].mxu0
      %v473 = vadd.f32 0.0, %v472
      %v474 = vpop.f32.mrb[0].mxu0
      %475 = vmatprep.mubr.bf16.mxu0 0
      %476 = vmatmul.mubr.bf16.gmra.mrb[0].mxu0 %v342
      %v477 = vpop.f32.mrb[0].mxu0
      %v478 = vadd.f32 0.0, %v477
      %v479 = vpop.f32.mrb[0].mxu0
      %v480 = vpop.f32.mrb[0].mxu0
      %v481 = vadd.f32 0.0, %v480
      %v482 = vpop.f32.mrb[0].mxu0
      %483 = vmatprep.mubr.bf16.mxu0 0
      %484 = vmatmul.mubr.bf16.gmra.mrb[0].mxu0 %v345
      %v485 = vpop.f32.mrb[0].mxu0
      %v486 = vadd.f32 0.0, %v485
      %v487 = vpop.f32.mrb[0].mxu0
      %v488 = vpop.f32.mrb[0].mxu0
      %v489 = vadd.f32 0.0, %v488
      %v490 = vpop.f32.mrb[0].mxu0
      %491 = vmatprep.mubr.bf16.mxu0 0
      %492 = vmatmul.mubr.bf16.gmra.mrb[0].mxu0 %v348
      %v493 = vpop.f32.mrb[0].mxu0
      %v494 = vadd.f32 0.0, %v493
      %v495 = vpop.f32.mrb[0].mxu0
      %v496 = vpop.f32.mrb[0].mxu0
      %v497 = vadd.f32 0.0, %v496
      %v498 = vpop.f32.mrb[0].mxu0
      %499 = vmatprep.mubr.bf16.mxu0 0
      %500 = vmatmul.mubr.bf16.gmra.mrb[0].mxu0 %v351
      %v501 = vpop.f32.mrb[0].mxu0
      %v502 = vadd.f32 0.0, %v501
      %v503 = vpop.f32.mrb[0].mxu0
      %v504 = vpop.f32.mrb[0].mxu0
      %v505 = vadd.f32 0.0, %v504
      %v506 = vpop.f32.mrb[0].mxu0
      %507 = vmatprep.mubr.bf16.mxu0 0
      %508 = vmatmul.mubr.bf16.gmra.mrb[0].mxu0 %v354
      %v509 = vpop.f32.mrb[0].mxu0
      %v510 = vadd.f32 0.0, %v509
      %v511 = vpop.f32.mrb[0].mxu0
      %v512 = vpop.f32.mrb[0].mxu0
      %v513 = vadd.f32 0.0, %v512
      %v514 = vpop.f32.mrb[0].mxu0
      %515 = vmatprep.mubr.bf16.mxu0 0
      %516 = vmatmul.mubr.bf16.gmra.mrb[0].mxu0 %v357
      %v517 = vpop.f32.mrb[0].mxu0
      %v518 = vadd.f32 0.0, %v517
      %v519 = vpop.f32.mrb[0].mxu0
      %v520 = vpop.f32.mrb[0].mxu0
      %v521 = vadd.f32 0.0, %v520
      %v522 = vpop.f32.mrb[0].mxu0
      %523 = vdwg.mxu0
      %524 = vst [vmem:[%s194] sm:$0xff] %v398
      %525 = vst [vmem:[%s194 + $0x8] sm:$0xff] %v401
      %526 = vst [vmem:[%s194 + $0x10] sm:$0xff] %v406
      %527 = vst [vmem:[%s194 + $0x18] sm:$0xff] %v409
      %528 = vst [vmem:[%s194 + $0x20] sm:$0xff] %v414
      %529 = vst [vmem:[%s194 + $0x28] sm:$0xff] %v417
      %530 = vst [vmem:[%s194 + $0x30] sm:$0xff] %v422
      %531 = vst [vmem:[%s194 + $0x38] sm:$0xff] %v425
      %532 = vst [vmem:[%s194 + $0x40] sm:$0xff] %v430
      %533 = vst [vmem:[%s194 + $0x48] sm:$0xff] %v433
      %534 = vst [vmem:[%s194 + $0x50] sm:$0xff] %v438
      %535 = vst [vmem:[%s194 + $0x58] sm:$0xff] %v441
      %536 = vst [vmem:[%s194 + $0x60] sm:$0xff] %v446
      %537 = vst [vmem:[%s194 + $0x68] sm:$0xff] %v449
      %538 = vst [vmem:[%s194 + $0x70] sm:$0xff] %v454
      %539 = vst [vmem:[%s194 + $0x78] sm:$0xff] %v457
      %540 = vst [vmem:[%s194 + $0x80] sm:$0xff] %v462
      %541 = vst [vmem:[%s194 + $0x88] sm:$0xff] %v465
      %542 = vst [vmem:[%s194 + $0x90] sm:$0xff] %v470
      %543 = vst [vmem:[%s194 + $0x98] sm:$0xff] %v473
      %544 = vst [vmem:[%s194 + $0xa0] sm:$0xff] %v478
      %545 = vst [vmem:[%s194 + $0xa8] sm:$0xff] %v481
      %546 = vst [vmem:[%s194 + $0xb0] sm:$0xff] %v486
      %547 = vst [vmem:[%s194 + $0xb8] sm:$0xff] %v489
      %548 = vst [vmem:[%s194 + $0xc0] sm:$0xff] %v494
      %549 = vst [vmem:[%s194 + $0xc8] sm:$0xff] %v497
      %550 = vst [vmem:[%s194 + $0xd0] sm:$0xff] %v502
      %551 = vst [vmem:[%s194 + $0xd8] sm:$0xff] %v505
      %552 = vst [vmem:[%s194 + $0xe0] sm:$0xff] %v510
      %553 = vst [vmem:[%s194 + $0xe8] sm:$0xff] %v513
      %554 = vst [vmem:[%s194 + $0xf0] sm:$0xff] %v518
      %555 = vst [vmem:[%s194 + $0xf8] sm:$0xff] %v521
      %p556 = scmp.eq.s32.totalorder %s16, 0
      // Predicated region
      $region29: #{inception_block_forward.8} parent=27 // pred_check
        %p557 = pneg %p556
      $region30: #{inception_block_forward.8} parent=27 // pred_check_branch
        %559 = sbr.rel (%p557) target = $region32
      $region31: #{inception_block_forward.8} parent=27 // pred_region
        %560 = vst [vmem:[%s3] sm:$0x1] 0.0
        %561 = vst [vmem:[%s4] sm:$0x1] 0.0
      $region32: #{inception_block_forward.8} parent=27 // pred_fallthru
        _
      %v562 = vld [vmem:[%s3] sm:$0x1]
      %v563 = vadd.f32 %v398, %v401
      %v564 = vadd.f32 %v563, %v406
      %v565 = vadd.f32 %v564, %v409
      %v566 = vadd.f32 %v565, %v414
      %v567 = vadd.f32 %v566, %v417
      %v568 = vadd.f32 %v567, %v422
      %v569 = vadd.f32 %v568, %v425
      %v570 = vadd.f32 %v569, %v430
      %v571 = vadd.f32 %v570, %v433
      %v572 = vadd.f32 %v571, %v438
      %v573 = vadd.f32 %v572, %v441
      %v574 = vadd.f32 %v573, %v446
      %v575 = vadd.f32 %v574, %v449
      %v576 = vadd.f32 %v575, %v454
      %v577 = vadd.f32 %v576, %v457
      %v578 = vadd.f32 %v577, %v462
      %v579 = vadd.f32 %v578, %v465
      %v580 = vadd.f32 %v579, %v470
      %v581 = vadd.f32 %v580, %v473
      %v582 = vadd.f32 %v581, %v478
      %v583 = vadd.f32 %v582, %v481
      %v584 = vadd.f32 %v583, %v486
      %v585 = vadd.f32 %v584, %v489
      %v586 = vadd.f32 %v585, %v494
      %v587 = vadd.f32 %v586, %v497
      %v588 = vadd.f32 %v587, %v502
      %v589 = vadd.f32 %v588, %v505
      %v590 = vadd.f32 %v589, %v510
      %v591 = vadd.f32 %v590, %v513
      %v592 = vadd.f32 %v591, %v518
      %v593 = vadd.f32 %v592, %v521
      %v594 = vrot.slane %v593, 4
      %v595 = vadd.f32 %v593, %v594
      %v596 = vrot.slane %v595, 2
      %v597 = vadd.f32 %v595, %v596
      %v598 = vrot.slane %v597, 1
      %v599 = vadd.f32 %v597, %v598
      %v600 = vadd.f32 %v562, %v599
      %601 = vst [vmem:[%s3] sm:$0x1] %v600
      %v602 = vld [vmem:[%s4] sm:$0x1]
      %v603 = vmul.f32 %v398, %v398
      %v604 = vmul.f32 %v401, %v401
      %v605 = vmul.f32 %v406, %v406
      %v606 = vmul.f32 %v409, %v409
      %v607 = vmul.f32 %v414, %v414
      %v608 = vmul.f32 %v417, %v417
      %v609 = vmul.f32 %v422, %v422
      %v610 = vmul.f32 %v425, %v425
      %v611 = vmul.f32 %v430, %v430
      %v612 = vmul.f32 %v433, %v433
      %v613 = vmul.f32 %v438, %v438
      %v614 = vmul.f32 %v441, %v441
      %v615 = vmul.f32 %v446, %v446
      %v616 = vmul.f32 %v449, %v449
      %v617 = vmul.f32 %v454, %v454
      %v618 = vmul.f32 %v457, %v457
      %v619 = vmul.f32 %v462, %v462
      %v620 = vmul.f32 %v465, %v465
      %v621 = vmul.f32 %v470, %v470
      %v622 = vmul.f32 %v473, %v473
      %v623 = vmul.f32 %v478, %v478
      %v624 = vmul.f32 %v481, %v481
      %v625 = vmul.f32 %v486, %v486
      %v626 = vmul.f32 %v489, %v489
      %v627 = vmul.f32 %v494, %v494
      %v628 = vmul.f32 %v497, %v497
      %v629 = vmul.f32 %v502, %v502
      %v630 = vmul.f32 %v505, %v505
      %v631 = vmul.f32 %v510, %v510
      %v632 = vmul.f32 %v513, %v513
      %v633 = vmul.f32 %v518, %v518
      %v634 = vmul.f32 %v521, %v521
      %v635 = vadd.f32 %v603, %v604
      %v636 = vadd.f32 %v635, %v605
      %v637 = vadd.f32 %v636, %v606
      %v638 = vadd.f32 %v637, %v607
      %v639 = vadd.f32 %v638, %v608
      %v640 = vadd.f32 %v639, %v609
      %v641 = vadd.f32 %v640, %v610
      %v642 = vadd.f32 %v641, %v611
      %v643 = vadd.f32 %v642, %v612
      %v644 = vadd.f32 %v643, %v613
      %v645 = vadd.f32 %v644, %v614
      %v646 = vadd.f32 %v645, %v615
      %v647 = vadd.f32 %v646, %v616
      %v648 = vadd.f32 %v647, %v617
      %v649 = vadd.f32 %v648, %v618
      %v650 = vadd.f32 %v649, %v619
      %v651 = vadd.f32 %v650, %v620
      %v652 = vadd.f32 %v651, %v621
      %v653 = vadd.f32 %v652, %v622
      %v654 = vadd.f32 %v653, %v623
      %v655 = vadd.f32 %v654, %v624
      %v656 = vadd.f32 %v655, %v625
      %v657 = vadd.f32 %v656, %v626
      %v658 = vadd.f32 %v657, %v627
      %v659 = vadd.f32 %v658, %v628
      %v660 = vadd.f32 %v659, %v629
      %v661 = vadd.f32 %v660, %v630
      %v662 = vadd.f32 %v661, %v631
      %v663 = vadd.f32 %v662, %v632
      %v664 = vadd.f32 %v663, %v633
      %v665 = vadd.f32 %v664, %v634
      %v666 = vrot.slane %v665, 4
      %v667 = vadd.f32 %v665, %v666
      %v668 = vrot.slane %v667, 2
      %v669 = vadd.f32 %v667, %v668
      %v670 = vrot.slane %v669, 1
      %v671 = vadd.f32 %v669, %v670
      %v672 = vadd.f32 %v602, %v671
      %673 = vst [vmem:[%s4] sm:$0x1] %v672
      %s674 = smul.u32 32, %s16
      %p675 = scmp.lt.s32.totalorder %s674, 63
      %s676 = scalar_select %p675, %s674, 63
      %s677 = smul.addr %s676, 8
      %s678 = scalar_lea.vmem %s2, %s677
      // Predicated region
      $region33: #{inception_block_forward.8} parent=27 // pred_check
        %p679 = pneg %p81
      $region34: #{inception_block_forward.8} parent=27 // pred_check_branch
        %681 = sbr.rel (%p679) target = $region36
      $region35: #{inception_block_forward.8} parent=27 // pred_region
        %s682 = smul.u32 32, %s16
      $region36: #{inception_block_forward.8} parent=27 // pred_fallthru
        _
      // Predicated region
      $region37: #{inception_block_forward.8} parent=27 // pred_check
        %p683 = pneg %p102
      $region38: #{inception_block_forward.8} parent=27 // pred_check_branch
        %685 = sbr.rel (%p683) target = $region40
      $region39: #{inception_block_forward.8} parent=27 // pred_region
        _
      $region40: #{inception_block_forward.8} parent=27 // pred_fallthru
        _
      // Predicated region
      $region41: #{inception_block_forward.8} parent=27 // pred_check
        %p686 = pneg %p123
      $region42: #{inception_block_forward.8} parent=27 // pred_check_branch
        %688 = sbr.rel (%p686) target = $region44
      $region43: #{inception_block_forward.8} parent=27 // pred_region
        _
      $region44: #{inception_block_forward.8} parent=27 // pred_fallthru
        _
      // Predicated region
      $region45: #{inception_block_forward.8} parent=27 // pred_check
        %p689 = pneg %p102
      $region46: #{inception_block_forward.8} parent=27 // pred_check_branch
        %691 = sbr.rel (%p689) target = $region48
      $region47: #{inception_block_forward.8} parent=27 // pred_region
        _
      $region48: #{inception_block_forward.8} parent=27 // pred_fallthru
        _
      // Predicated region
      $region49: #{inception_block_forward.8} parent=27 // pred_check
        %p692 = pneg %p123
      $region50: #{inception_block_forward.8} parent=27 // pred_check_branch
        %694 = sbr.rel (%p692) target = $region52
      $region51: #{inception_block_forward.8} parent=27 // pred_region
        _
      $region52: #{inception_block_forward.8} parent=27 // pred_fallthru
        _
    $region28: #{inception_block_forward.8} parent=5 // pred_fallthru
      _
    %p695 = scmp.le.s32.totalorder 2, %s11
    // Predicated region
    $region53: #{inception_block_forward.8} parent=5 // pred_check
      %p696 = pneg %p695
    $region54: #{inception_block_forward.8} parent=5 // pred_check_branch
      %698 = sbr.rel (%p696) target = $region56
    $region55: #{inception_block_forward.8} parent=5 // pred_region
      %s699 = ssub.s32 %s11, 2
      // Predicated region
      $region57: #{inception_block_forward.8} parent=55 // pred_check
        %p700 = pneg %p87
      $region58: #{inception_block_forward.8} parent=55 // pred_check_branch
        %702 = sbr.rel (%p700) target = $region60
      $region59: #{inception_block_forward.8} parent=55 // pred_region
        %s703 = smul.u32 32, %s17
        %p704 = scmp.lt.s32.totalorder %s703, 63
        %s705 = scalar_select %p704, %s703, 63
        %s706 = smul.addr %s705, 8
        %s707 = scalar_lea.vmem %s2, %s706
      $region60: #{inception_block_forward.8} parent=55 // pred_fallthru
        _
    $region56: #{inception_block_forward.8} parent=5 // pred_fallthru
      _
  $region6: #{inception_block_forward.8} parent=0 // loop_footer
    %s15 = sadd.s32 1, %s11
  $region7: #{inception_block_forward.8} parent=0 // loop_footer_branch
    %10 = sbr.rel target = $region3
  $region8: #{inception_block_forward.8} parent=0 // loop_exit
    _

// kernel: inception_block_forward.10
$region0: #{inception_block_forward.10}
  #allocation0 [shape = 'u32[]', space=smem, size = 0x4, offset = 0x4, fixed_abs, tag = 'smem constant byte address 0x4 - core index']
  #allocation1 [shape = 'u32[144,128]{1,0:T(1,128)}', space=vmem, size = 0x12000, scoped, tag = 'internal scratch']
  %s0 = inlined_call_operand.vmem [shape: bf16[512,36], index: 0, kind: input, shape index: {}]
  %s1 = inlined_call_operand.vmem [shape: bf16[36,128], index: 1, kind: input, shape index: {}]
  %s2 = inlined_call_operand.vmem [shape: f32[512,128], index: 2, kind: output, shape index: {0}]
  %s3 = inlined_call_operand.vmem [shape: f32[1,128], index: 3, kind: output, shape index: {1}]
  %s4 = inlined_call_operand.vmem [shape: f32[1,128], index: 4, kind: output, shape index: {2}]
  %5 = xla_tuple %s2, %s3, %s4
  %s6 = sld [smem:[#allocation0]]
  $region61: #{inception_block_forward.10} parent=0
    _
  %s8 = ssub.s32 1, %s6
  %s9 = scalar_select 0, %s8, %s6
  loop: start=0, step=1, limit=4
  $region2: #{inception_block_forward.10} parent=0 // loop_pre_header
    _
  $region3: #{inception_block_forward.10} parent=0 // loop_header
    %s11 = sphi 0, %s15
    %p12 = scmp.ge.s32.totalorder %s11, 4
    %s21 = sphi 0, %s23
    %s24 = sphi 0, %s21
    %s25 = sphi 0, %s24
    %s41 = sphi 0, %s25
    %s45 = sphi 0, %s45
    %s47 = sphi 0, %s45
    %s48 = sphi 0, %s47
    %s62 = sphi 0, %s48
    %s68 = sphi 0, %s70
    %s71 = sphi 0, %s68
    %s72 = sphi 0, %s71
    %s88 = sphi 0, %s72
    %s92 = sphi 0, %s92
    %s94 = sphi 0, %s92
    %s95 = sphi 0, %s94
    %s109 = sphi 0, %s95
    %s113 = sphi 0, %s113
    %s115 = sphi 0, %s113
    %s116 = sphi 0, %s115
    %s130 = sphi 0, %s116
  $region4: #{inception_block_forward.10} parent=0 // loop_header_branch
    %14 = sbr.rel (%p12) target = $region8
  $region5: #{inception_block_forward.10} parent=0 // loop_body
    %s16 = ssub.s32 %s11, 1
    %s17 = ssub.s32 %s11, 2
    %s18 = sadd.s32 %s11, 1
    %s19 = ssub.s32 %s11, %s18
    %p20 = scmp.eq.s32.totalorder %s19, 0
    %s22 = sadd.s32 %s21, 1
    %s23 = scalar_select %p20, %s21, %s22
    %p26 = pneg %p20
    %p27 = scmp.eq.s32.totalorder %s11, 1
    %p28 = por %p26, %p27
    %p29 = scmp.ne.s32.totalorder %s21, %s24
    %p30 = scmp.eq.s32.totalorder %s11, 0
    %p31 = por %p29, %p30
    %p32 = scmp.ne.s32.totalorder %s21, %s24
    %p33 = scmp.eq.s32.totalorder %s16, 1
    %p34 = por %p32, %p33
    %p35 = scmp.ne.s32.totalorder %s24, %s25
    %p36 = scmp.eq.s32.totalorder %s16, 0
    %p37 = por %p35, %p36
    %p38 = scmp.ne.s32.totalorder %s24, %s25
    %p39 = scmp.eq.s32.totalorder %s17, 1
    %p40 = por %p38, %p39
    %p42 = scmp.ne.s32.totalorder %s25, %s41
    %p43 = scmp.eq.s32.totalorder %s17, 0
    %p44 = por %p42, %p43
    %s46 = sadd.s32 %s45, 1
    %p49 = scmp.eq.s32.totalorder %s11, 1
    %p50 = scmp.ne.s32.totalorder %s45, %s47
    %p51 = scmp.eq.s32.totalorder %s11, 0
    %p52 = por %p50, %p51
    %p53 = scmp.ne.s32.totalorder %s45, %s47
    %p54 = scmp.eq.s32.totalorder %s16, 1
    %p55 = por %p53, %p54
    %p56 = scmp.ne.s32.totalorder %s47, %s48
    %p57 = scmp.eq.s32.totalorder %s16, 0
    %p58 = por %p56, %p57
    %p59 = scmp.ne.s32.totalorder %s47, %s48
    %p60 = scmp.eq.s32.totalorder %s17, 1
    %p61 = por %p59, %p60
    %p63 = scmp.ne.s32.totalorder %s48, %s62
    %p64 = scmp.eq.s32.totalorder %s17, 0
    %p65 = por %p63, %p64
    %s66 = ssub.s32 %s11, %s18
    %p67 = scmp.eq.s32.totalorder %s66, 0
    %s69 = sadd.s32 %s68, 1
    %s70 = scalar_select %p67, %s68, %s69
    %p73 = pneg %p67
    %p74 = scmp.eq.s32.totalorder %s11, 1
    %p75 = por %p73, %p74
    %p76 = scmp.ne.s32.totalorder %s68, %s71
    %p77 = scmp.eq.s32.totalorder %s11, 0
    %p78 = por %p76, %p77
    %p79 = scmp.ne.s32.totalorder %s68, %s71
    %p80 = scmp.eq.s32.totalorder %s16, 1
    %p81 = por %p79, %p80
    %p82 = scmp.ne.s32.totalorder %s71, %s72
    %p83 = scmp.eq.s32.totalorder %s16, 0
    %p84 = por %p82, %p83
    %p85 = scmp.ne.s32.totalorder %s71, %s72
    %p86 = scmp.eq.s32.totalorder %s17, 1
    %p87 = por %p85, %p86
    %p89 = scmp.ne.s32.totalorder %s72, %s88
    %p90 = scmp.eq.s32.totalorder %s17, 0
    %p91 = por %p89, %p90
    %s93 = sadd.s32 %s92, 1
    %p96 = scmp.eq.s32.totalorder %s11, 1
    %p97 = scmp.ne.s32.totalorder %s92, %s94
    %p98 = scmp.eq.s32.totalorder %s11, 0
    %p99 = por %p97, %p98
    %p100 = scmp.ne.s32.totalorder %s92, %s94
    %p101 = scmp.eq.s32.totalorder %s16, 1
    %p102 = por %p100, %p101
    %p103 = scmp.ne.s32.totalorder %s94, %s95
    %p104 = scmp.eq.s32.totalorder %s16, 0
    %p105 = por %p103, %p104
    %p106 = scmp.ne.s32.totalorder %s94, %s95
    %p107 = scmp.eq.s32.totalorder %s17, 1
    %p108 = por %p106, %p107
    %p110 = scmp.ne.s32.totalorder %s95, %s109
    %p111 = scmp.eq.s32.totalorder %s17, 0
    %p112 = por %p110, %p111
    %s114 = sadd.s32 %s113, 1
    %p117 = scmp.eq.s32.totalorder %s11, 1
    %p118 = scmp.ne.s32.totalorder %s113, %s115
    %p119 = scmp.eq.s32.totalorder %s11, 0
    %p120 = por %p118, %p119
    %p121 = scmp.ne.s32.totalorder %s113, %s115
    %p122 = scmp.eq.s32.totalorder %s16, 1
    %p123 = por %p121, %p122
    %p124 = scmp.ne.s32.totalorder %s115, %s116
    %p125 = scmp.eq.s32.totalorder %s16, 0
    %p126 = por %p124, %p125
    %p127 = scmp.ne.s32.totalorder %s115, %s116
    %p128 = scmp.eq.s32.totalorder %s17, 1
    %p129 = por %p127, %p128
    %p131 = scmp.ne.s32.totalorder %s116, %s130
    %p132 = scmp.eq.s32.totalorder %s17, 0
    %p133 = por %p131, %p132
    %p134 = scmp.le.s32.totalorder 1, %s11
    %p135 = scmp.lt.s32.totalorder %s11, 3
    %p136 = pnand %p134, %p135
    %p137 = pneg %p136
    // Predicated region
    $region9: #{inception_block_forward.10} parent=5 // pred_check
      _
    $region10: #{inception_block_forward.10} parent=5 // pred_check_branch
      %139 = sbr.rel (%p136) target = $region12
    $region11: #{inception_block_forward.10} parent=5 // pred_region
      %s140 = ssub.s32 %s11, 1
      // Predicated region
      $region13: #{inception_block_forward.10} parent=11 // pred_check
        %p141 = pneg %p58
      $region14: #{inception_block_forward.10} parent=11 // pred_check_branch
        %143 = sbr.rel (%p141) target = $region16
      $region15: #{inception_block_forward.10} parent=11 // pred_region
        _
      $region16: #{inception_block_forward.10} parent=11 // pred_fallthru
        _
    $region12: #{inception_block_forward.10} parent=5 // pred_fallthru
      _
    %p144 = scmp.lt.s32.totalorder %s11, 2
    // Predicated region
    $region17: #{inception_block_forward.10} parent=5 // pred_check
      %p145 = pneg %p144
    $region18: #{inception_block_forward.10} parent=5 // pred_check_branch
      %147 = sbr.rel (%p145) target = $region20
    $region19: #{inception_block_forward.10} parent=5 // pred_region
      // Predicated region
      $region21: #{inception_block_forward.10} parent=19 // pred_check
        %p148 = pneg %p31
      $region22: #{inception_block_forward.10} parent=19 // pred_check_branch
        %150 = sbr.rel (%p148) target = $region24
      $region23: #{inception_block_forward.10} parent=19 // pred_region
        %s151 = smul.u32 32, %s11
        %p152 = scmp.lt.s32.totalorder %s151, 63
        %s153 = scalar_select %p152, %s151, 63
        %s154 = smul.addr %s153, 4
        %s155 = scalar_lea.vmem %s0, %s154
        %s156 = smul.u32 32, %s11
      $region24: #{inception_block_forward.10} parent=19 // pred_fallthru
        _
    $region20: #{inception_block_forward.10} parent=5 // pred_fallthru
      _
    %p157 = scmp.le.s32.totalorder 1, %s11
    %p158 = scmp.lt.s32.totalorder %s11, 3
    %p159 = pnand %p157, %p158
    %p160 = pneg %p159
    // Predicated region
    $region25: #{inception_block_forward.10} parent=5 // pred_check
      _
    $region26: #{inception_block_forward.10} parent=5 // pred_check_branch
      %162 = sbr.rel (%p159) target = $region28
    $region27: #{inception_block_forward.10} parent=5 // pred_region
      %s163 = ssub.s32 %s11, 1
      %s164 = smul.u32 32, %s16
      %p165 = scmp.lt.s32.totalorder %s164, 63
      %s166 = scalar_select %p165, %s164, 63
      %s167 = smul.addr %s166, 4
      %s168 = scalar_lea.vmem %s0, %s167
      %p169 = pneg %p37
      %p170 = pneg %p34
      %p171 = pneg %p58
      %p172 = pneg %p55
      %p173 = pneg %p84
      %p174 = pneg %p81
      %s175 = smul.u32 32, %s16
      %p176 = scmp.lt.s32.totalorder %s175, 63
      %s177 = scalar_select %p176, %s175, 63
      %s178 = smul.addr %s177, 8
      %s179 = scalar_lea.vmem %s2, %s178
      %p180 = pneg %p105
      %p181 = pneg %p102
      %p182 = pneg %p126
      %p183 = pneg %p123
      %s184 = smul.u32 32, %s16
      %p185 = scmp.lt.s32.totalorder %s184, 63
      %s186 = scalar_select %p185, %s184, 63
      %s187 = smul.addr %s186, 4
      %s188 = scalar_lea.vmem %s0, %s187
      %s189 = smul.u32 32, %s16
      %s190 = smul.u32 32, %s16
      %p191 = scmp.lt.s32.totalorder %s190, 63
      %s192 = scalar_select %p191, %s190, 63
      %s193 = smul.addr %s192, 8
      %s194 = scalar_lea.vmem %s2, %s193
      %s195 = smul.u32 32, %s16
      %v197 = vld [vmem:[%s188] sm:$0xf]
      %v198 = vld [vmem:[%s188 + $0x4] sm:$0xf]
      %v199 = vld [vmem:[%s188 + $0x8] sm:$0xf]
      %v200 = vld [vmem:[%s188 + $0xc] sm:$0xf]
      %v201 = vld [vmem:[%s188 + $0x10] sm:$0xf]
      %v202 = vld [vmem:[%s188 + $0x14] sm:$0xf]
      %v203 = vld [vmem:[%s188 + $0x18] sm:$0xf]
      %v204 = vld [vmem:[%s188 + $0x1c] sm:$0xf]
      %v205 = vld [vmem:[%s188 + $0x20] sm:$0xf]
      %v206 = vld [vmem:[%s188 + $0x24] sm:$0xf]
      %v207 = vld [vmem:[%s188 + $0x28] sm:$0xf]
      %v208 = vld [vmem:[%s188 + $0x2c] sm:$0xf]
      %v209 = vld [vmem:[%s188 + $0x30] sm:$0xf]
      %v210 = vld [vmem:[%s188 + $0x34] sm:$0xf]
      %v211 = vld [vmem:[%s188 + $0x38] sm:$0xf]
      %v212 = vld [vmem:[%s188 + $0x3c] sm:$0xf]
      %v213 = vld [vmem:[%s188 + $0x40] sm:$0xf]
      %v214 = vld [vmem:[%s188 + $0x44] sm:$0xf]
      %v215 = vld [vmem:[%s188 + $0x48] sm:$0xf]
      %v216 = vld [vmem:[%s188 + $0x4c] sm:$0xf]
      %v217 = vld [vmem:[%s188 + $0x50] sm:$0xf]
      %v218 = vld [vmem:[%s188 + $0x54] sm:$0xf]
      %v219 = vld [vmem:[%s188 + $0x58] sm:$0xf]
      %v220 = vld [vmem:[%s188 + $0x5c] sm:$0xf]
      %v221 = vld [vmem:[%s188 + $0x60] sm:$0xf]
      %v222 = vld [vmem:[%s188 + $0x64] sm:$0xf]
      %v223 = vld [vmem:[%s188 + $0x68] sm:$0xf]
      %v224 = vld [vmem:[%s188 + $0x6c] sm:$0xf]
      %v225 = vld [vmem:[%s188 + $0x70] sm:$0xf]
      %v226 = vld [vmem:[%s188 + $0x74] sm:$0xf]
      %v227 = vld [vmem:[%s188 + $0x78] sm:$0xf]
      %v228 = vld [vmem:[%s188 + $0x7c] sm:$0xf]
      %v229 = vld [vmem:[%s1] sm:$0xf]
      %v230 = vld [vmem:[%s1 + $0x4] sm:$0xf]
      %v231 = vld [vmem:[%s1 + $0x8] sm:$0xf]
      %v232 = vld [vmem:[%s1 + $0xc] sm:$0xf]
      %v233 = vld [vmem:[%s1 + $0x10] sm:$0x3]
      %v266 = vunpack.c.l.b16 %v197
      %v267 = vunpack.c.l.b16 %v198
      %v268 = vunpack.c.l.b16 %v199
      %v269 = vunpack.c.l.b16 %v200
      %v270 = vunpack.c.l.b16 %v201
      %v271 = vunpack.c.l.b16 %v202
      %v272 = vunpack.c.l.b16 %v203
      %v273 = vunpack.c.l.b16 %v204
      %v274 = vunpack.c.l.b16 %v205
      %v275 = vunpack.c.l.b16 %v206
      %v276 = vunpack.c.l.b16 %v207
      %v277 = vunpack.c.l.b16 %v208
      %v278 = vunpack.c.l.b16 %v209
      %v279 = vunpack.c.l.b16 %v210
      %v280 = vunpack.c.l.b16 %v211
      %v281 = vunpack.c.l.b16 %v212
      %v282 = vunpack.c.l.b16 %v213
      %v283 = vunpack.c.l.b16 %v214
      %v284 = vunpack.c.l.b16 %v215
      %v285 = vunpack.c.l.b16 %v216
      %v286 = vunpack.c.l.b16 %v217
      %v287 = vunpack.c.l.b16 %v218
      %v288 = vunpack.c.l.b16 %v219
      %v289 = vunpack.c.l.b16 %v220
      %v290 = vunpack.c.l.b16 %v221
      %v291 = vunpack.c.l.b16 %v222
      %v292 = vunpack.c.l.b16 %v223
      %v293 = vunpack.c.l.b16 %v224
      %v294 = vunpack.c.l.b16 %v225
      %v295 = vunpack.c.l.b16 %v226
      %v296 = vunpack.c.l.b16 %v227
      %v297 = vunpack.c.l.b16 %v228
      %v298 = vpack.c.b16 %v267, %v266
      %v299 = vpack.c.b16 %v269, %v268
      %v300 = vpack.c.b16 %v271, %v270
      %v301 = vpack.c.b16 %v273, %v272
      %v302 = vpack.c.b16 %v275, %v274
      %v303 = vpack.c.b16 %v277, %v276
      %v304 = vpack.c.b16 %v279, %v278
      %v305 = vpack.c.b16 %v281, %v280
      %v306 = vpack.c.b16 %v283, %v282
      %v307 = vpack.c.b16 %v285, %v284
      %v308 = vpack.c.b16 %v287, %v286
      %v309 = vpack.c.b16 %v289, %v288
      %v310 = vpack.c.b16 %v291, %v290
      %v311 = vpack.c.b16 %v293, %v292
      %v312 = vpack.c.b16 %v295, %v294
      %v313 = vpack.c.b16 %v297, %v296
      %v319 = vunpack.c.l.b16 %v229
      %v320 = vunpack.c.l.b16 %v230
      %v321 = vunpack.c.l.b16 %v231
      %v322 = vunpack.c.l.b16 %v232
      %v323 = vunpack.c.l.b16 %v233
      %v324 = vpack.c.b16 %v320, %v319
      %v325 = vpack.c.b16 %v322, %v321
      %v326 = vpack.c.b16 %v323, %v323
      %vm329 = vcmask 293888
      %v331 = vsel %vm329, %v298, 0
      %v334 = vsel %vm329, %v299, 0
      %v337 = vsel %vm329, %v300, 0
      %v340 = vsel %vm329, %v301, 0
      %v343 = vsel %vm329, %v302, 0
      %v346 = vsel %vm329, %v303, 0
      %v349 = vsel %vm329, %v304, 0
      %v352 = vsel %vm329, %v305, 0
      %v355 = vsel %vm329, %v306, 0
      %v358 = vsel %vm329, %v307, 0
      %v361 = vsel %vm329, %v308, 0
      %v364 = vsel %vm329, %v309, 0
      %v367 = vsel %vm329, %v310, 0
      %v370 = vsel %vm329, %v311, 0
      %v373 = vsel %vm329, %v312, 0
      %v376 = vsel %vm329, %v313, 0
      %vm378 = vcmask 1041408
      %v380 = vsel %vm378, %v326, 0
      %382 = vmatprep.subr.bf16.mxu0 0
      %383 = vmatpush1.bf16.msra.mxu0 %v324
      %384 = vmatprep.subr.bf16.mxu0 0
      %385 = vmatpush1.bf16.msra.mxu0 %v325
      %386 = vmatprep.subr.bf16.mxu0 0
      %387 = vmatpush1.bf16.msra.mxu0 %v380
      %388 = vmatprep.subr.bf16.mxu0 0
      %389 = vmatpush1.bf16.msra.mxu0 0
      %390 = vmatprep.subr.bf16.mxu0 0
      %391 = vmatpush1.bf16.msra.mxu0 0
      %392 = vmatprep.subr.bf16.mxu0 0
      %393 = vmatpush1.bf16.msra.mxu0 0
      %394 = vmatprep.subr.bf16.mxu0 0
      %395 = vmatpush1.bf16.msra.mxu0 0
      %396 = vmatprep.subr.bf16.mxu0 0
      %397 = vmatpush1.bf16.msra.mxu0 0
      %398 = vmatprep.subr.bf16.mxu0 0
      %399 = vmatpush1.bf16.msra.mxu0 0
      %400 = vmatprep.subr.bf16.mxu0 0
      %401 = vmatpush1.bf16.msra.mxu0 0
      %402 = vmatprep.subr.bf16.mxu0 0
      %403 = vmatpush1.bf16.msra.mxu0 0
      %404 = vmatprep.subr.bf16.mxu0 0
      %405 = vmatpush1.bf16.msra.mxu0 0
      %406 = vmatprep.subr.bf16.mxu0 0
      %407 = vmatpush1.bf16.msra.mxu0 0
      %408 = vmatprep.subr.bf16.mxu0 0
      %409 = vmatpush1.bf16.msra.mxu0 0
      %410 = vmatprep.subr.bf16.mxu0 0
      %411 = vmatpush1.bf16.msra.mxu0 0
      %412 = vmatprep.subr.bf16.mxu0 0
      %413 = vmatpush1.bf16.msra.mxu0 0
      %414 = vmatprep.mubr.bf16.mxu0 0
      %415 = vmatmul.mubr.bf16.gmra.mrb[0].mxu0 %v331
      %v416 = vpop.f32.mrb[0].mxu0
      %v417 = vadd.f32 0.0, %v416
      %v418 = vpop.f32.mrb[0].mxu0
      %v419 = vpop.f32.mrb[0].mxu0
      %v420 = vadd.f32 0.0, %v419
      %v421 = vpop.f32.mrb[0].mxu0
      %422 = vmatprep.mubr.bf16.mxu0 0
      %423 = vmatmul.mubr.bf16.gmra.mrb[0].mxu0 %v334
      %v424 = vpop.f32.mrb[0].mxu0
      %v425 = vadd.f32 0.0, %v424
      %v426 = vpop.f32.mrb[0].mxu0
      %v427 = vpop.f32.mrb[0].mxu0
      %v428 = vadd.f32 0.0, %v427
      %v429 = vpop.f32.mrb[0].mxu0
      %430 = vmatprep.mubr.bf16.mxu0 0
      %431 = vmatmul.mubr.bf16.gmra.mrb[0].mxu0 %v337
      %v432 = vpop.f32.mrb[0].mxu0
      %v433 = vadd.f32 0.0, %v432
      %v434 = vpop.f32.mrb[0].mxu0
      %v435 = vpop.f32.mrb[0].mxu0
      %v436 = vadd.f32 0.0, %v435
      %v437 = vpop.f32.mrb[0].mxu0
      %438 = vmatprep.mubr.bf16.mxu0 0
      %439 = vmatmul.mubr.bf16.gmra.mrb[0].mxu0 %v340
      %v440 = vpop.f32.mrb[0].mxu0
      %v441 = vadd.f32 0.0, %v440
      %v442 = vpop.f32.mrb[0].mxu0
      %v443 = vpop.f32.mrb[0].mxu0
      %v444 = vadd.f32 0.0, %v443
      %v445 = vpop.f32.mrb[0].mxu0
      %446 = vmatprep.mubr.bf16.mxu0 0
      %447 = vmatmul.mubr.bf16.gmra.mrb[0].mxu0 %v343
      %v448 = vpop.f32.mrb[0].mxu0
      %v449 = vadd.f32 0.0, %v448
      %v450 = vpop.f32.mrb[0].mxu0
      %v451 = vpop.f32.mrb[0].mxu0
      %v452 = vadd.f32 0.0, %v451
      %v453 = vpop.f32.mrb[0].mxu0
      %454 = vmatprep.mubr.bf16.mxu0 0
      %455 = vmatmul.mubr.bf16.gmra.mrb[0].mxu0 %v346
      %v456 = vpop.f32.mrb[0].mxu0
      %v457 = vadd.f32 0.0, %v456
      %v458 = vpop.f32.mrb[0].mxu0
      %v459 = vpop.f32.mrb[0].mxu0
      %v460 = vadd.f32 0.0, %v459
      %v461 = vpop.f32.mrb[0].mxu0
      %462 = vmatprep.mubr.bf16.mxu0 0
      %463 = vmatmul.mubr.bf16.gmra.mrb[0].mxu0 %v349
      %v464 = vpop.f32.mrb[0].mxu0
      %v465 = vadd.f32 0.0, %v464
      %v466 = vpop.f32.mrb[0].mxu0
      %v467 = vpop.f32.mrb[0].mxu0
      %v468 = vadd.f32 0.0, %v467
      %v469 = vpop.f32.mrb[0].mxu0
      %470 = vmatprep.mubr.bf16.mxu0 0
      %471 = vmatmul.mubr.bf16.gmra.mrb[0].mxu0 %v352
      %v472 = vpop.f32.mrb[0].mxu0
      %v473 = vadd.f32 0.0, %v472
      %v474 = vpop.f32.mrb[0].mxu0
      %v475 = vpop.f32.mrb[0].mxu0
      %v476 = vadd.f32 0.0, %v475
      %v477 = vpop.f32.mrb[0].mxu0
      %478 = vmatprep.mubr.bf16.mxu0 0
      %479 = vmatmul.mubr.bf16.gmra.mrb[0].mxu0 %v355
      %v480 = vpop.f32.mrb[0].mxu0
      %v481 = vadd.f32 0.0, %v480
      %v482 = vpop.f32.mrb[0].mxu0
      %v483 = vpop.f32.mrb[0].mxu0
      %v484 = vadd.f32 0.0, %v483
      %v485 = vpop.f32.mrb[0].mxu0
      %486 = vmatprep.mubr.bf16.mxu0 0
      %487 = vmatmul.mubr.bf16.gmra.mrb[0].mxu0 %v358
      %v488 = vpop.f32.mrb[0].mxu0
      %v489 = vadd.f32 0.0, %v488
      %v490 = vpop.f32.mrb[0].mxu0
      %v491 = vpop.f32.mrb[0].mxu0
      %v492 = vadd.f32 0.0, %v491
      %v493 = vpop.f32.mrb[0].mxu0
      %494 = vmatprep.mubr.bf16.mxu0 0
      %495 = vmatmul.mubr.bf16.gmra.mrb[0].mxu0 %v361
      %v496 = vpop.f32.mrb[0].mxu0
      %v497 = vadd.f32 0.0, %v496
      %v498 = vpop.f32.mrb[0].mxu0
      %v499 = vpop.f32.mrb[0].mxu0
      %v500 = vadd.f32 0.0, %v499
      %v501 = vpop.f32.mrb[0].mxu0
      %502 = vmatprep.mubr.bf16.mxu0 0
      %503 = vmatmul.mubr.bf16.gmra.mrb[0].mxu0 %v364
      %v504 = vpop.f32.mrb[0].mxu0
      %v505 = vadd.f32 0.0, %v504
      %v506 = vpop.f32.mrb[0].mxu0
      %v507 = vpop.f32.mrb[0].mxu0
      %v508 = vadd.f32 0.0, %v507
      %v509 = vpop.f32.mrb[0].mxu0
      %510 = vmatprep.mubr.bf16.mxu0 0
      %511 = vmatmul.mubr.bf16.gmra.mrb[0].mxu0 %v367
      %v512 = vpop.f32.mrb[0].mxu0
      %v513 = vadd.f32 0.0, %v512
      %v514 = vpop.f32.mrb[0].mxu0
      %v515 = vpop.f32.mrb[0].mxu0
      %v516 = vadd.f32 0.0, %v515
      %v517 = vpop.f32.mrb[0].mxu0
      %518 = vmatprep.mubr.bf16.mxu0 0
      %519 = vmatmul.mubr.bf16.gmra.mrb[0].mxu0 %v370
      %v520 = vpop.f32.mrb[0].mxu0
      %v521 = vadd.f32 0.0, %v520
      %v522 = vpop.f32.mrb[0].mxu0
      %v523 = vpop.f32.mrb[0].mxu0
      %v524 = vadd.f32 0.0, %v523
      %v525 = vpop.f32.mrb[0].mxu0
      %526 = vmatprep.mubr.bf16.mxu0 0
      %527 = vmatmul.mubr.bf16.gmra.mrb[0].mxu0 %v373
      %v528 = vpop.f32.mrb[0].mxu0
      %v529 = vadd.f32 0.0, %v528
      %v530 = vpop.f32.mrb[0].mxu0
      %v531 = vpop.f32.mrb[0].mxu0
      %v532 = vadd.f32 0.0, %v531
      %v533 = vpop.f32.mrb[0].mxu0
      %534 = vmatprep.mubr.bf16.mxu0 0
      %535 = vmatmul.mubr.bf16.gmra.mrb[0].mxu0 %v376
      %v536 = vpop.f32.mrb[0].mxu0
      %v537 = vadd.f32 0.0, %v536
      %v538 = vpop.f32.mrb[0].mxu0
      %v539 = vpop.f32.mrb[0].mxu0
      %v540 = vadd.f32 0.0, %v539
      %v541 = vpop.f32.mrb[0].mxu0
      %542 = vdwg.mxu0
      %543 = vst [vmem:[%s194] sm:$0xff] %v417
      %544 = vst [vmem:[%s194 + $0x8] sm:$0xff] %v420
      %545 = vst [vmem:[%s194 + $0x10] sm:$0xff] %v425
      %546 = vst [vmem:[%s194 + $0x18] sm:$0xff] %v428
      %547 = vst [vmem:[%s194 + $0x20] sm:$0xff] %v433
      %548 = vst [vmem:[%s194 + $0x28] sm:$0xff] %v436
      %549 = vst [vmem:[%s194 + $0x30] sm:$0xff] %v441
      %550 = vst [vmem:[%s194 + $0x38] sm:$0xff] %v444
      %551 = vst [vmem:[%s194 + $0x40] sm:$0xff] %v449
      %552 = vst [vmem:[%s194 + $0x48] sm:$0xff] %v452
      %553 = vst [vmem:[%s194 + $0x50] sm:$0xff] %v457
      %554 = vst [vmem:[%s194 + $0x58] sm:$0xff] %v460
      %555 = vst [vmem:[%s194 + $0x60] sm:$0xff] %v465
      %556 = vst [vmem:[%s194 + $0x68] sm:$0xff] %v468
      %557 = vst [vmem:[%s194 + $0x70] sm:$0xff] %v473
      %558 = vst [vmem:[%s194 + $0x78] sm:$0xff] %v476
      %559 = vst [vmem:[%s194 + $0x80] sm:$0xff] %v481
      %560 = vst [vmem:[%s194 + $0x88] sm:$0xff] %v484
      %561 = vst [vmem:[%s194 + $0x90] sm:$0xff] %v489
      %562 = vst [vmem:[%s194 + $0x98] sm:$0xff] %v492
      %563 = vst [vmem:[%s194 + $0xa0] sm:$0xff] %v497
      %564 = vst [vmem:[%s194 + $0xa8] sm:$0xff] %v500
      %565 = vst [vmem:[%s194 + $0xb0] sm:$0xff] %v505
      %566 = vst [vmem:[%s194 + $0xb8] sm:$0xff] %v508
      %567 = vst [vmem:[%s194 + $0xc0] sm:$0xff] %v513
      %568 = vst [vmem:[%s194 + $0xc8] sm:$0xff] %v516
      %569 = vst [vmem:[%s194 + $0xd0] sm:$0xff] %v521
      %570 = vst [vmem:[%s194 + $0xd8] sm:$0xff] %v524
      %571 = vst [vmem:[%s194 + $0xe0] sm:$0xff] %v529
      %572 = vst [vmem:[%s194 + $0xe8] sm:$0xff] %v532
      %573 = vst [vmem:[%s194 + $0xf0] sm:$0xff] %v537
      %574 = vst [vmem:[%s194 + $0xf8] sm:$0xff] %v540
      %p575 = scmp.eq.s32.totalorder %s16, 0
      // Predicated region
      $region29: #{inception_block_forward.10} parent=27 // pred_check
        %p576 = pneg %p575
      $region30: #{inception_block_forward.10} parent=27 // pred_check_branch
        %578 = sbr.rel (%p576) target = $region32
      $region31: #{inception_block_forward.10} parent=27 // pred_region
        %579 = vst [vmem:[%s3] sm:$0x1] 0.0
        %580 = vst [vmem:[%s4] sm:$0x1] 0.0
      $region32: #{inception_block_forward.10} parent=27 // pred_fallthru
        _
      %v581 = vld [vmem:[%s3] sm:$0x1]
      %v582 = vadd.f32 %v417, %v420
      %v583 = vadd.f32 %v582, %v425
      %v584 = vadd.f32 %v583, %v428
      %v585 = vadd.f32 %v584, %v433
      %v586 = vadd.f32 %v585, %v436
      %v587 = vadd.f32 %v586, %v441
      %v588 = vadd.f32 %v587, %v444
      %v589 = vadd.f32 %v588, %v449
      %v590 = vadd.f32 %v589, %v452
      %v591 = vadd.f32 %v590, %v457
      %v592 = vadd.f32 %v591, %v460
      %v593 = vadd.f32 %v592, %v465
      %v594 = vadd.f32 %v593, %v468
      %v595 = vadd.f32 %v594, %v473
      %v596 = vadd.f32 %v595, %v476
      %v597 = vadd.f32 %v596, %v481
      %v598 = vadd.f32 %v597, %v484
      %v599 = vadd.f32 %v598, %v489
      %v600 = vadd.f32 %v599, %v492
      %v601 = vadd.f32 %v600, %v497
      %v602 = vadd.f32 %v601, %v500
      %v603 = vadd.f32 %v602, %v505
      %v604 = vadd.f32 %v603, %v508
      %v605 = vadd.f32 %v604, %v513
      %v606 = vadd.f32 %v605, %v516
      %v607 = vadd.f32 %v606, %v521
      %v608 = vadd.f32 %v607, %v524
      %v609 = vadd.f32 %v608, %v529
      %v610 = vadd.f32 %v609, %v532
      %v611 = vadd.f32 %v610, %v537
      %v612 = vadd.f32 %v611, %v540
      %v613 = vrot.slane %v612, 4
      %v614 = vadd.f32 %v612, %v613
      %v615 = vrot.slane %v614, 2
      %v616 = vadd.f32 %v614, %v615
      %v617 = vrot.slane %v616, 1
      %v618 = vadd.f32 %v616, %v617
      %v619 = vadd.f32 %v581, %v618
      %620 = vst [vmem:[%s3] sm:$0x1] %v619
      %v621 = vld [vmem:[%s4] sm:$0x1]
      %v622 = vmul.f32 %v417, %v417
      %v623 = vmul.f32 %v420, %v420
      %v624 = vmul.f32 %v425, %v425
      %v625 = vmul.f32 %v428, %v428
      %v626 = vmul.f32 %v433, %v433
      %v627 = vmul.f32 %v436, %v436
      %v628 = vmul.f32 %v441, %v441
      %v629 = vmul.f32 %v444, %v444
      %v630 = vmul.f32 %v449, %v449
      %v631 = vmul.f32 %v452, %v452
      %v632 = vmul.f32 %v457, %v457
      %v633 = vmul.f32 %v460, %v460
      %v634 = vmul.f32 %v465, %v465
      %v635 = vmul.f32 %v468, %v468
      %v636 = vmul.f32 %v473, %v473
      %v637 = vmul.f32 %v476, %v476
      %v638 = vmul.f32 %v481, %v481
      %v639 = vmul.f32 %v484, %v484
      %v640 = vmul.f32 %v489, %v489
      %v641 = vmul.f32 %v492, %v492
      %v642 = vmul.f32 %v497, %v497
      %v643 = vmul.f32 %v500, %v500
      %v644 = vmul.f32 %v505, %v505
      %v645 = vmul.f32 %v508, %v508
      %v646 = vmul.f32 %v513, %v513
      %v647 = vmul.f32 %v516, %v516
      %v648 = vmul.f32 %v521, %v521
      %v649 = vmul.f32 %v524, %v524
      %v650 = vmul.f32 %v529, %v529
      %v651 = vmul.f32 %v532, %v532
      %v652 = vmul.f32 %v537, %v537
      %v653 = vmul.f32 %v540, %v540
      %v654 = vadd.f32 %v622, %v623
      %v655 = vadd.f32 %v654, %v624
      %v656 = vadd.f32 %v655, %v625
      %v657 = vadd.f32 %v656, %v626
      %v658 = vadd.f32 %v657, %v627
      %v659 = vadd.f32 %v658, %v628
      %v660 = vadd.f32 %v659, %v629
      %v661 = vadd.f32 %v660, %v630
      %v662 = vadd.f32 %v661, %v631
      %v663 = vadd.f32 %v662, %v632
      %v664 = vadd.f32 %v663, %v633
      %v665 = vadd.f32 %v664, %v634
      %v666 = vadd.f32 %v665, %v635
      %v667 = vadd.f32 %v666, %v636
      %v668 = vadd.f32 %v667, %v637
      %v669 = vadd.f32 %v668, %v638
      %v670 = vadd.f32 %v669, %v639
      %v671 = vadd.f32 %v670, %v640
      %v672 = vadd.f32 %v671, %v641
      %v673 = vadd.f32 %v672, %v642
      %v674 = vadd.f32 %v673, %v643
      %v675 = vadd.f32 %v674, %v644
      %v676 = vadd.f32 %v675, %v645
      %v677 = vadd.f32 %v676, %v646
      %v678 = vadd.f32 %v677, %v647
      %v679 = vadd.f32 %v678, %v648
      %v680 = vadd.f32 %v679, %v649
      %v681 = vadd.f32 %v680, %v650
      %v682 = vadd.f32 %v681, %v651
      %v683 = vadd.f32 %v682, %v652
      %v684 = vadd.f32 %v683, %v653
      %v685 = vrot.slane %v684, 4
      %v686 = vadd.f32 %v684, %v685
      %v687 = vrot.slane %v686, 2
      %v688 = vadd.f32 %v686, %v687
      %v689 = vrot.slane %v688, 1
      %v690 = vadd.f32 %v688, %v689
      %v691 = vadd.f32 %v621, %v690
      %692 = vst [vmem:[%s4] sm:$0x1] %v691
      %s693 = smul.u32 32, %s16
      %p694 = scmp.lt.s32.totalorder %s693, 63
      %s695 = scalar_select %p694, %s693, 63
      %s696 = smul.addr %s695, 8
      %s697 = scalar_lea.vmem %s2, %s696
      // Predicated region
      $region33: #{inception_block_forward.10} parent=27 // pred_check
        %p698 = pneg %p81
      $region34: #{inception_block_forward.10} parent=27 // pred_check_branch
        %700 = sbr.rel (%p698) target = $region36
      $region35: #{inception_block_forward.10} parent=27 // pred_region
        %s701 = smul.u32 32, %s16
      $region36: #{inception_block_forward.10} parent=27 // pred_fallthru
        _
      // Predicated region
      $region37: #{inception_block_forward.10} parent=27 // pred_check
        %p702 = pneg %p102
      $region38: #{inception_block_forward.10} parent=27 // pred_check_branch
        %704 = sbr.rel (%p702) target = $region40
      $region39: #{inception_block_forward.10} parent=27 // pred_region
        _
      $region40: #{inception_block_forward.10} parent=27 // pred_fallthru
        _
      // Predicated region
      $region41: #{inception_block_forward.10} parent=27 // pred_check
        %p705 = pneg %p123
      $region42: #{inception_block_forward.10} parent=27 // pred_check_branch
        %707 = sbr.rel (%p705) target = $region44
      $region43: #{inception_block_forward.10} parent=27 // pred_region
        _
      $region44: #{inception_block_forward.10} parent=27 // pred_fallthru
        _
      // Predicated region
      $region45: #{inception_block_forward.10} parent=27 // pred_check
        %p708 = pneg %p102
      $region46: #{inception_block_forward.10} parent=27 // pred_check_branch
        %710 = sbr.rel (%p708) target = $region48
      $region47: #{inception_block_forward.10} parent=27 // pred_region
        _
      $region48: #{inception_block_forward.10} parent=27 // pred_fallthru
        _
      // Predicated region
      $region49: #{inception_block_forward.10} parent=27 // pred_check
        %p711 = pneg %p123
      $region50: #{inception_block_forward.10} parent=27 // pred_check_branch
        %713 = sbr.rel (%p711) target = $region52
      $region51: #{inception_block_forward.10} parent=27 // pred_region
        _
      $region52: #{inception_block_forward.10} parent=27 // pred_fallthru
        _
    $region28: #{inception_block_forward.10} parent=5 // pred_fallthru
      _
    %p714 = scmp.le.s32.totalorder 2, %s11
    // Predicated region
    $region53: #{inception_block_forward.10} parent=5 // pred_check
      %p715 = pneg %p714
    $region54: #{inception_block_forward.10} parent=5 // pred_check_branch
      %717 = sbr.rel (%p715) target = $region56
    $region55: #{inception_block_forward.10} parent=5 // pred_region
      %s718 = ssub.s32 %s11, 2
      // Predicated region
      $region57: #{inception_block_forward.10} parent=55 // pred_check
        %p719 = pneg %p87
      $region58: #{inception_block_forward.10} parent=55 // pred_check_branch
        %721 = sbr.rel (%p719) target = $region60
      $region59: #{inception_block_forward.10} parent=55 // pred_region
        %s722 = smul.u32 32, %s17
        %p723 = scmp.lt.s32.totalorder %s722, 63
        %s724 = scalar_select %p723, %s722, 63
        %s725 = smul.addr %s724, 8
        %s726 = scalar_lea.vmem %s2, %s725
      $region60: #{inception_block_forward.10} parent=55 // pred_fallthru
        _
    $region56: #{inception_block_forward.10} parent=5 // pred_fallthru
      _
  $region6: #{inception_block_forward.10} parent=0 // loop_footer
    %s15 = sadd.s32 1, %s11
  $region7: #{inception_block_forward.10} parent=0 // loop_footer_branch
    %10 = sbr.rel target = $region3
  $region8: #{inception_block_forward.10} parent=0 // loop_exit
    _

// kernel: inception_block_forward.12
$region0: #{inception_block_forward.12}
  #allocation0 [shape = 'u32[]', space=smem, size = 0x4, offset = 0x4, fixed_abs, tag = 'smem constant byte address 0x4 - core index']
  #allocation1 [shape = 'u32[144,128]{1,0:T(1,128)}', space=vmem, size = 0x12000, scoped, tag = 'internal scratch']
  %s0 = inlined_call_operand.vmem [shape: bf16[512,100], index: 0, kind: input, shape index: {}]
  %s1 = inlined_call_operand.vmem [shape: bf16[100,128], index: 1, kind: input, shape index: {}]
  %s2 = inlined_call_operand.vmem [shape: f32[512,128], index: 2, kind: output, shape index: {0}]
  %s3 = inlined_call_operand.vmem [shape: f32[1,128], index: 3, kind: output, shape index: {1}]
  %s4 = inlined_call_operand.vmem [shape: f32[1,128], index: 4, kind: output, shape index: {2}]
  %5 = xla_tuple %s2, %s3, %s4
  %s6 = sld [smem:[#allocation0]]
  $region61: #{inception_block_forward.12} parent=0
    _
  %s8 = ssub.s32 1, %s6
  %s9 = scalar_select 0, %s8, %s6
  loop: start=0, step=1, limit=4
  $region2: #{inception_block_forward.12} parent=0 // loop_pre_header
    _
  $region3: #{inception_block_forward.12} parent=0 // loop_header
    %s11 = sphi 0, %s15
    %p12 = scmp.ge.s32.totalorder %s11, 4
    %s21 = sphi 0, %s23
    %s24 = sphi 0, %s21
    %s25 = sphi 0, %s24
    %s41 = sphi 0, %s25
    %s45 = sphi 0, %s45
    %s47 = sphi 0, %s45
    %s48 = sphi 0, %s47
    %s62 = sphi 0, %s48
    %s68 = sphi 0, %s70
    %s71 = sphi 0, %s68
    %s72 = sphi 0, %s71
    %s88 = sphi 0, %s72
    %s92 = sphi 0, %s92
    %s94 = sphi 0, %s92
    %s95 = sphi 0, %s94
    %s109 = sphi 0, %s95
    %s113 = sphi 0, %s113
    %s115 = sphi 0, %s113
    %s116 = sphi 0, %s115
    %s130 = sphi 0, %s116
  $region4: #{inception_block_forward.12} parent=0 // loop_header_branch
    %14 = sbr.rel (%p12) target = $region8
  $region5: #{inception_block_forward.12} parent=0 // loop_body
    %s16 = ssub.s32 %s11, 1
    %s17 = ssub.s32 %s11, 2
    %s18 = sadd.s32 %s11, 1
    %s19 = ssub.s32 %s11, %s18
    %p20 = scmp.eq.s32.totalorder %s19, 0
    %s22 = sadd.s32 %s21, 1
    %s23 = scalar_select %p20, %s21, %s22
    %p26 = pneg %p20
    %p27 = scmp.eq.s32.totalorder %s11, 1
    %p28 = por %p26, %p27
    %p29 = scmp.ne.s32.totalorder %s21, %s24
    %p30 = scmp.eq.s32.totalorder %s11, 0
    %p31 = por %p29, %p30
    %p32 = scmp.ne.s32.totalorder %s21, %s24
    %p33 = scmp.eq.s32.totalorder %s16, 1
    %p34 = por %p32, %p33
    %p35 = scmp.ne.s32.totalorder %s24, %s25
    %p36 = scmp.eq.s32.totalorder %s16, 0
    %p37 = por %p35, %p36
    %p38 = scmp.ne.s32.totalorder %s24, %s25
    %p39 = scmp.eq.s32.totalorder %s17, 1
    %p40 = por %p38, %p39
    %p42 = scmp.ne.s32.totalorder %s25, %s41
    %p43 = scmp.eq.s32.totalorder %s17, 0
    %p44 = por %p42, %p43
    %s46 = sadd.s32 %s45, 1
    %p49 = scmp.eq.s32.totalorder %s11, 1
    %p50 = scmp.ne.s32.totalorder %s45, %s47
    %p51 = scmp.eq.s32.totalorder %s11, 0
    %p52 = por %p50, %p51
    %p53 = scmp.ne.s32.totalorder %s45, %s47
    %p54 = scmp.eq.s32.totalorder %s16, 1
    %p55 = por %p53, %p54
    %p56 = scmp.ne.s32.totalorder %s47, %s48
    %p57 = scmp.eq.s32.totalorder %s16, 0
    %p58 = por %p56, %p57
    %p59 = scmp.ne.s32.totalorder %s47, %s48
    %p60 = scmp.eq.s32.totalorder %s17, 1
    %p61 = por %p59, %p60
    %p63 = scmp.ne.s32.totalorder %s48, %s62
    %p64 = scmp.eq.s32.totalorder %s17, 0
    %p65 = por %p63, %p64
    %s66 = ssub.s32 %s11, %s18
    %p67 = scmp.eq.s32.totalorder %s66, 0
    %s69 = sadd.s32 %s68, 1
    %s70 = scalar_select %p67, %s68, %s69
    %p73 = pneg %p67
    %p74 = scmp.eq.s32.totalorder %s11, 1
    %p75 = por %p73, %p74
    %p76 = scmp.ne.s32.totalorder %s68, %s71
    %p77 = scmp.eq.s32.totalorder %s11, 0
    %p78 = por %p76, %p77
    %p79 = scmp.ne.s32.totalorder %s68, %s71
    %p80 = scmp.eq.s32.totalorder %s16, 1
    %p81 = por %p79, %p80
    %p82 = scmp.ne.s32.totalorder %s71, %s72
    %p83 = scmp.eq.s32.totalorder %s16, 0
    %p84 = por %p82, %p83
    %p85 = scmp.ne.s32.totalorder %s71, %s72
    %p86 = scmp.eq.s32.totalorder %s17, 1
    %p87 = por %p85, %p86
    %p89 = scmp.ne.s32.totalorder %s72, %s88
    %p90 = scmp.eq.s32.totalorder %s17, 0
    %p91 = por %p89, %p90
    %s93 = sadd.s32 %s92, 1
    %p96 = scmp.eq.s32.totalorder %s11, 1
    %p97 = scmp.ne.s32.totalorder %s92, %s94
    %p98 = scmp.eq.s32.totalorder %s11, 0
    %p99 = por %p97, %p98
    %p100 = scmp.ne.s32.totalorder %s92, %s94
    %p101 = scmp.eq.s32.totalorder %s16, 1
    %p102 = por %p100, %p101
    %p103 = scmp.ne.s32.totalorder %s94, %s95
    %p104 = scmp.eq.s32.totalorder %s16, 0
    %p105 = por %p103, %p104
    %p106 = scmp.ne.s32.totalorder %s94, %s95
    %p107 = scmp.eq.s32.totalorder %s17, 1
    %p108 = por %p106, %p107
    %p110 = scmp.ne.s32.totalorder %s95, %s109
    %p111 = scmp.eq.s32.totalorder %s17, 0
    %p112 = por %p110, %p111
    %s114 = sadd.s32 %s113, 1
    %p117 = scmp.eq.s32.totalorder %s11, 1
    %p118 = scmp.ne.s32.totalorder %s113, %s115
    %p119 = scmp.eq.s32.totalorder %s11, 0
    %p120 = por %p118, %p119
    %p121 = scmp.ne.s32.totalorder %s113, %s115
    %p122 = scmp.eq.s32.totalorder %s16, 1
    %p123 = por %p121, %p122
    %p124 = scmp.ne.s32.totalorder %s115, %s116
    %p125 = scmp.eq.s32.totalorder %s16, 0
    %p126 = por %p124, %p125
    %p127 = scmp.ne.s32.totalorder %s115, %s116
    %p128 = scmp.eq.s32.totalorder %s17, 1
    %p129 = por %p127, %p128
    %p131 = scmp.ne.s32.totalorder %s116, %s130
    %p132 = scmp.eq.s32.totalorder %s17, 0
    %p133 = por %p131, %p132
    %p134 = scmp.le.s32.totalorder 1, %s11
    %p135 = scmp.lt.s32.totalorder %s11, 3
    %p136 = pnand %p134, %p135
    %p137 = pneg %p136
    // Predicated region
    $region9: #{inception_block_forward.12} parent=5 // pred_check
      _
    $region10: #{inception_block_forward.12} parent=5 // pred_check_branch
      %139 = sbr.rel (%p136) target = $region12
    $region11: #{inception_block_forward.12} parent=5 // pred_region
      %s140 = ssub.s32 %s11, 1
      // Predicated region
      $region13: #{inception_block_forward.12} parent=11 // pred_check
        %p141 = pneg %p58
      $region14: #{inception_block_forward.12} parent=11 // pred_check_branch
        %143 = sbr.rel (%p141) target = $region16
      $region15: #{inception_block_forward.12} parent=11 // pred_region
        _
      $region16: #{inception_block_forward.12} parent=11 // pred_fallthru
        _
    $region12: #{inception_block_forward.12} parent=5 // pred_fallthru
      _
    %p144 = scmp.lt.s32.totalorder %s11, 2
    // Predicated region
    $region17: #{inception_block_forward.12} parent=5 // pred_check
      %p145 = pneg %p144
    $region18: #{inception_block_forward.12} parent=5 // pred_check_branch
      %147 = sbr.rel (%p145) target = $region20
    $region19: #{inception_block_forward.12} parent=5 // pred_region
      // Predicated region
      $region21: #{inception_block_forward.12} parent=19 // pred_check
        %p148 = pneg %p31
      $region22: #{inception_block_forward.12} parent=19 // pred_check_branch
        %150 = sbr.rel (%p148) target = $region24
      $region23: #{inception_block_forward.12} parent=19 // pred_region
        %s151 = smul.u32 32, %s11
        %p152 = scmp.lt.s32.totalorder %s151, 63
        %s153 = scalar_select %p152, %s151, 63
        %s154 = smul.addr %s153, 4
        %s155 = scalar_lea.vmem %s0, %s154
        %s156 = smul.u32 32, %s11
      $region24: #{inception_block_forward.12} parent=19 // pred_fallthru
        _
    $region20: #{inception_block_forward.12} parent=5 // pred_fallthru
      _
    %p157 = scmp.le.s32.totalorder 1, %s11
    %p158 = scmp.lt.s32.totalorder %s11, 3
    %p159 = pnand %p157, %p158
    %p160 = pneg %p159
    // Predicated region
    $region25: #{inception_block_forward.12} parent=5 // pred_check
      _
    $region26: #{inception_block_forward.12} parent=5 // pred_check_branch
      %162 = sbr.rel (%p159) target = $region28
    $region27: #{inception_block_forward.12} parent=5 // pred_region
      %s163 = ssub.s32 %s11, 1
      %s164 = smul.u32 32, %s16
      %p165 = scmp.lt.s32.totalorder %s164, 63
      %s166 = scalar_select %p165, %s164, 63
      %s167 = smul.addr %s166, 4
      %s168 = scalar_lea.vmem %s0, %s167
      %p169 = pneg %p37
      %p170 = pneg %p34
      %p171 = pneg %p58
      %p172 = pneg %p55
      %p173 = pneg %p84
      %p174 = pneg %p81
      %s175 = smul.u32 32, %s16
      %p176 = scmp.lt.s32.totalorder %s175, 63
      %s177 = scalar_select %p176, %s175, 63
      %s178 = smul.addr %s177, 8
      %s179 = scalar_lea.vmem %s2, %s178
      %p180 = pneg %p105
      %p181 = pneg %p102
      %p182 = pneg %p126
      %p183 = pneg %p123
      %s184 = smul.u32 32, %s16
      %p185 = scmp.lt.s32.totalorder %s184, 63
      %s186 = scalar_select %p185, %s184, 63
      %s187 = smul.addr %s186, 4
      %s188 = scalar_lea.vmem %s0, %s187
      %s189 = smul.u32 32, %s16
      %s190 = smul.u32 32, %s16
      %p191 = scmp.lt.s32.totalorder %s190, 63
      %s192 = scalar_select %p191, %s190, 63
      %s193 = smul.addr %s192, 8
      %s194 = scalar_lea.vmem %s2, %s193
      %s195 = smul.u32 32, %s16
      %v197 = vld [vmem:[%s188] sm:$0xf]
      %v198 = vld [vmem:[%s188 + $0x4] sm:$0xf]
      %v199 = vld [vmem:[%s188 + $0x8] sm:$0xf]
      %v200 = vld [vmem:[%s188 + $0xc] sm:$0xf]
      %v201 = vld [vmem:[%s188 + $0x10] sm:$0xf]
      %v202 = vld [vmem:[%s188 + $0x14] sm:$0xf]
      %v203 = vld [vmem:[%s188 + $0x18] sm:$0xf]
      %v204 = vld [vmem:[%s188 + $0x1c] sm:$0xf]
      %v205 = vld [vmem:[%s188 + $0x20] sm:$0xf]
      %v206 = vld [vmem:[%s188 + $0x24] sm:$0xf]
      %v207 = vld [vmem:[%s188 + $0x28] sm:$0xf]
      %v208 = vld [vmem:[%s188 + $0x2c] sm:$0xf]
      %v209 = vld [vmem:[%s188 + $0x30] sm:$0xf]
      %v210 = vld [vmem:[%s188 + $0x34] sm:$0xf]
      %v211 = vld [vmem:[%s188 + $0x38] sm:$0xf]
      %v212 = vld [vmem:[%s188 + $0x3c] sm:$0xf]
      %v213 = vld [vmem:[%s188 + $0x40] sm:$0xf]
      %v214 = vld [vmem:[%s188 + $0x44] sm:$0xf]
      %v215 = vld [vmem:[%s188 + $0x48] sm:$0xf]
      %v216 = vld [vmem:[%s188 + $0x4c] sm:$0xf]
      %v217 = vld [vmem:[%s188 + $0x50] sm:$0xf]
      %v218 = vld [vmem:[%s188 + $0x54] sm:$0xf]
      %v219 = vld [vmem:[%s188 + $0x58] sm:$0xf]
      %v220 = vld [vmem:[%s188 + $0x5c] sm:$0xf]
      %v221 = vld [vmem:[%s188 + $0x60] sm:$0xf]
      %v222 = vld [vmem:[%s188 + $0x64] sm:$0xf]
      %v223 = vld [vmem:[%s188 + $0x68] sm:$0xf]
      %v224 = vld [vmem:[%s188 + $0x6c] sm:$0xf]
      %v225 = vld [vmem:[%s188 + $0x70] sm:$0xf]
      %v226 = vld [vmem:[%s188 + $0x74] sm:$0xf]
      %v227 = vld [vmem:[%s188 + $0x78] sm:$0xf]
      %v228 = vld [vmem:[%s188 + $0x7c] sm:$0xf]
      %v229 = vld [vmem:[%s1] sm:$0xf]
      %v230 = vld [vmem:[%s1 + $0x4] sm:$0xf]
      %v231 = vld [vmem:[%s1 + $0x8] sm:$0xf]
      %v232 = vld [vmem:[%s1 + $0xc] sm:$0xf]
      %v233 = vld [vmem:[%s1 + $0x10] sm:$0xf]
      %v234 = vld [vmem:[%s1 + $0x14] sm:$0xf]
      %v235 = vld [vmem:[%s1 + $0x18] sm:$0xf]
      %v236 = vld [vmem:[%s1 + $0x1c] sm:$0xf]
      %v237 = vld [vmem:[%s1 + $0x20] sm:$0xf]
      %v238 = vld [vmem:[%s1 + $0x24] sm:$0xf]
      %v239 = vld [vmem:[%s1 + $0x28] sm:$0xf]
      %v240 = vld [vmem:[%s1 + $0x2c] sm:$0xf]
      %v241 = vld [vmem:[%s1 + $0x30] sm:$0x3]
      %v274 = vunpack.c.l.b16 %v197
      %v275 = vunpack.c.l.b16 %v198
      %v276 = vunpack.c.l.b16 %v199
      %v277 = vunpack.c.l.b16 %v200
      %v278 = vunpack.c.l.b16 %v201
      %v279 = vunpack.c.l.b16 %v202
      %v280 = vunpack.c.l.b16 %v203
      %v281 = vunpack.c.l.b16 %v204
      %v282 = vunpack.c.l.b16 %v205
      %v283 = vunpack.c.l.b16 %v206
      %v284 = vunpack.c.l.b16 %v207
      %v285 = vunpack.c.l.b16 %v208
      %v286 = vunpack.c.l.b16 %v209
      %v287 = vunpack.c.l.b16 %v210
      %v288 = vunpack.c.l.b16 %v211
      %v289 = vunpack.c.l.b16 %v212
      %v290 = vunpack.c.l.b16 %v213
      %v291 = vunpack.c.l.b16 %v214
      %v292 = vunpack.c.l.b16 %v215
      %v293 = vunpack.c.l.b16 %v216
      %v294 = vunpack.c.l.b16 %v217
      %v295 = vunpack.c.l.b16 %v218
      %v296 = vunpack.c.l.b16 %v219
      %v297 = vunpack.c.l.b16 %v220
      %v298 = vunpack.c.l.b16 %v221
      %v299 = vunpack.c.l.b16 %v222
      %v300 = vunpack.c.l.b16 %v223
      %v301 = vunpack.c.l.b16 %v224
      %v302 = vunpack.c.l.b16 %v225
      %v303 = vunpack.c.l.b16 %v226
      %v304 = vunpack.c.l.b16 %v227
      %v305 = vunpack.c.l.b16 %v228
      %v306 = vpack.c.b16 %v275, %v274
      %v307 = vpack.c.b16 %v277, %v276
      %v308 = vpack.c.b16 %v279, %v278
      %v309 = vpack.c.b16 %v281, %v280
      %v310 = vpack.c.b16 %v283, %v282
      %v311 = vpack.c.b16 %v285, %v284
      %v312 = vpack.c.b16 %v287, %v286
      %v313 = vpack.c.b16 %v289, %v288
      %v314 = vpack.c.b16 %v291, %v290
      %v315 = vpack.c.b16 %v293, %v292
      %v316 = vpack.c.b16 %v295, %v294
      %v317 = vpack.c.b16 %v297, %v296
      %v318 = vpack.c.b16 %v299, %v298
      %v319 = vpack.c.b16 %v301, %v300
      %v320 = vpack.c.b16 %v303, %v302
      %v321 = vpack.c.b16 %v305, %v304
      %v335 = vunpack.c.l.b16 %v229
      %v336 = vunpack.c.l.b16 %v230
      %v337 = vunpack.c.l.b16 %v231
      %v338 = vunpack.c.l.b16 %v232
      %v339 = vunpack.c.l.b16 %v233
      %v340 = vunpack.c.l.b16 %v234
      %v341 = vunpack.c.l.b16 %v235
      %v342 = vunpack.c.l.b16 %v236
      %v343 = vunpack.c.l.b16 %v237
      %v344 = vunpack.c.l.b16 %v238
      %v345 = vunpack.c.l.b16 %v239
      %v346 = vunpack.c.l.b16 %v240
      %v347 = vunpack.c.l.b16 %v241
      %v348 = vpack.c.b16 %v336, %v335
      %v349 = vpack.c.b16 %v338, %v337
      %v350 = vpack.c.b16 %v340, %v339
      %v351 = vpack.c.b16 %v342, %v341
      %v352 = vpack.c.b16 %v344, %v343
      %v353 = vpack.c.b16 %v346, %v345
      %v354 = vpack.c.b16 %v347, %v347
      %vm361 = vcmask 818176
      %v363 = vsel %vm361, %v306, 0
      %v366 = vsel %vm361, %v307, 0
      %v369 = vsel %vm361, %v308, 0
      %v372 = vsel %vm361, %v309, 0
      %v375 = vsel %vm361, %v310, 0
      %v378 = vsel %vm361, %v311, 0
      %v381 = vsel %vm361, %v312, 0
      %v384 = vsel %vm361, %v313, 0
      %v387 = vsel %vm361, %v314, 0
      %v390 = vsel %vm361, %v315, 0
      %v393 = vsel %vm361, %v316, 0
      %v396 = vsel %vm361, %v317, 0
      %v399 = vsel %vm361, %v318, 0
      %v402 = vsel %vm361, %v319, 0
      %v405 = vsel %vm361, %v320, 0
      %v408 = vsel %vm361, %v321, 0
      %vm410 = vcmask 1041408
      %v412 = vsel %vm410, %v354, 0
      %414 = vmatprep.subr.bf16.mxu0 0
      %415 = vmatpush1.bf16.msra.mxu0 %v348
      %416 = vmatprep.subr.bf16.mxu0 0
      %417 = vmatpush1.bf16.msra.mxu0 %v349
      %418 = vmatprep.subr.bf16.mxu0 0
      %419 = vmatpush1.bf16.msra.mxu0 %v350
      %420 = vmatprep.subr.bf16.mxu0 0
      %421 = vmatpush1.bf16.msra.mxu0 %v351
      %422 = vmatprep.subr.bf16.mxu0 0
      %423 = vmatpush1.bf16.msra.mxu0 %v352
      %424 = vmatprep.subr.bf16.mxu0 0
      %425 = vmatpush1.bf16.msra.mxu0 %v353
      %426 = vmatprep.subr.bf16.mxu0 0
      %427 = vmatpush1.bf16.msra.mxu0 %v412
      %428 = vmatprep.subr.bf16.mxu0 0
      %429 = vmatpush1.bf16.msra.mxu0 0
      %430 = vmatprep.subr.bf16.mxu0 0
      %431 = vmatpush1.bf16.msra.mxu0 0
      %432 = vmatprep.subr.bf16.mxu0 0
      %433 = vmatpush1.bf16.msra.mxu0 0
      %434 = vmatprep.subr.bf16.mxu0 0
      %435 = vmatpush1.bf16.msra.mxu0 0
      %436 = vmatprep.subr.bf16.mxu0 0
      %437 = vmatpush1.bf16.msra.mxu0 0
      %438 = vmatprep.subr.bf16.mxu0 0
      %439 = vmatpush1.bf16.msra.mxu0 0
      %440 = vmatprep.subr.bf16.mxu0 0
      %441 = vmatpush1.bf16.msra.mxu0 0
      %442 = vmatprep.subr.bf16.mxu0 0
      %443 = vmatpush1.bf16.msra.mxu0 0
      %444 = vmatprep.subr.bf16.mxu0 0
      %445 = vmatpush1.bf16.msra.mxu0 0
      %446 = vmatprep.mubr.bf16.mxu0 0
      %447 = vmatmul.mubr.bf16.gmra.mrb[0].mxu0 %v363
      %v448 = vpop.f32.mrb[0].mxu0
      %v449 = vadd.f32 0.0, %v448
      %v450 = vpop.f32.mrb[0].mxu0
      %v451 = vpop.f32.mrb[0].mxu0
      %v452 = vadd.f32 0.0, %v451
      %v453 = vpop.f32.mrb[0].mxu0
      %454 = vmatprep.mubr.bf16.mxu0 0
      %455 = vmatmul.mubr.bf16.gmra.mrb[0].mxu0 %v366
      %v456 = vpop.f32.mrb[0].mxu0
      %v457 = vadd.f32 0.0, %v456
      %v458 = vpop.f32.mrb[0].mxu0
      %v459 = vpop.f32.mrb[0].mxu0
      %v460 = vadd.f32 0.0, %v459
      %v461 = vpop.f32.mrb[0].mxu0
      %462 = vmatprep.mubr.bf16.mxu0 0
      %463 = vmatmul.mubr.bf16.gmra.mrb[0].mxu0 %v369
      %v464 = vpop.f32.mrb[0].mxu0
      %v465 = vadd.f32 0.0, %v464
      %v466 = vpop.f32.mrb[0].mxu0
      %v467 = vpop.f32.mrb[0].mxu0
      %v468 = vadd.f32 0.0, %v467
      %v469 = vpop.f32.mrb[0].mxu0
      %470 = vmatprep.mubr.bf16.mxu0 0
      %471 = vmatmul.mubr.bf16.gmra.mrb[0].mxu0 %v372
      %v472 = vpop.f32.mrb[0].mxu0
      %v473 = vadd.f32 0.0, %v472
      %v474 = vpop.f32.mrb[0].mxu0
      %v475 = vpop.f32.mrb[0].mxu0
      %v476 = vadd.f32 0.0, %v475
      %v477 = vpop.f32.mrb[0].mxu0
      %478 = vmatprep.mubr.bf16.mxu0 0
      %479 = vmatmul.mubr.bf16.gmra.mrb[0].mxu0 %v375
      %v480 = vpop.f32.mrb[0].mxu0
      %v481 = vadd.f32 0.0, %v480
      %v482 = vpop.f32.mrb[0].mxu0
      %v483 = vpop.f32.mrb[0].mxu0
      %v484 = vadd.f32 0.0, %v483
      %v485 = vpop.f32.mrb[0].mxu0
      %486 = vmatprep.mubr.bf16.mxu0 0
      %487 = vmatmul.mubr.bf16.gmra.mrb[0].mxu0 %v378
      %v488 = vpop.f32.mrb[0].mxu0
      %v489 = vadd.f32 0.0, %v488
      %v490 = vpop.f32.mrb[0].mxu0
      %v491 = vpop.f32.mrb[0].mxu0
      %v492 = vadd.f32 0.0, %v491
      %v493 = vpop.f32.mrb[0].mxu0
      %494 = vmatprep.mubr.bf16.mxu0 0
      %495 = vmatmul.mubr.bf16.gmra.mrb[0].mxu0 %v381
      %v496 = vpop.f32.mrb[0].mxu0
      %v497 = vadd.f32 0.0, %v496
      %v498 = vpop.f32.mrb[0].mxu0
      %v499 = vpop.f32.mrb[0].mxu0
      %v500 = vadd.f32 0.0, %v499
      %v501 = vpop.f32.mrb[0].mxu0
      %502 = vmatprep.mubr.bf16.mxu0 0
      %503 = vmatmul.mubr.bf16.gmra.mrb[0].mxu0 %v384
      %v504 = vpop.f32.mrb[0].mxu0
      %v505 = vadd.f32 0.0, %v504
      %v506 = vpop.f32.mrb[0].mxu0
      %v507 = vpop.f32.mrb[0].mxu0
      %v508 = vadd.f32 0.0, %v507
      %v509 = vpop.f32.mrb[0].mxu0
      %510 = vmatprep.mubr.bf16.mxu0 0
      %511 = vmatmul.mubr.bf16.gmra.mrb[0].mxu0 %v387
      %v512 = vpop.f32.mrb[0].mxu0
      %v513 = vadd.f32 0.0, %v512
      %v514 = vpop.f32.mrb[0].mxu0
      %v515 = vpop.f32.mrb[0].mxu0
      %v516 = vadd.f32 0.0, %v515
      %v517 = vpop.f32.mrb[0].mxu0
      %518 = vmatprep.mubr.bf16.mxu0 0
      %519 = vmatmul.mubr.bf16.gmra.mrb[0].mxu0 %v390
      %v520 = vpop.f32.mrb[0].mxu0
      %v521 = vadd.f32 0.0, %v520
      %v522 = vpop.f32.mrb[0].mxu0
      %v523 = vpop.f32.mrb[0].mxu0
      %v524 = vadd.f32 0.0, %v523
      %v525 = vpop.f32.mrb[0].mxu0
      %526 = vmatprep.mubr.bf16.mxu0 0
      %527 = vmatmul.mubr.bf16.gmra.mrb[0].mxu0 %v393
      %v528 = vpop.f32.mrb[0].mxu0
      %v529 = vadd.f32 0.0, %v528
      %v530 = vpop.f32.mrb[0].mxu0
      %v531 = vpop.f32.mrb[0].mxu0
      %v532 = vadd.f32 0.0, %v531
      %v533 = vpop.f32.mrb[0].mxu0
      %534 = vmatprep.mubr.bf16.mxu0 0
      %535 = vmatmul.mubr.bf16.gmra.mrb[0].mxu0 %v396
      %v536 = vpop.f32.mrb[0].mxu0
      %v537 = vadd.f32 0.0, %v536
      %v538 = vpop.f32.mrb[0].mxu0
      %v539 = vpop.f32.mrb[0].mxu0
      %v540 = vadd.f32 0.0, %v539
      %v541 = vpop.f32.mrb[0].mxu0
      %542 = vmatprep.mubr.bf16.mxu0 0
      %543 = vmatmul.mubr.bf16.gmra.mrb[0].mxu0 %v399
      %v544 = vpop.f32.mrb[0].mxu0
      %v545 = vadd.f32 0.0, %v544
      %v546 = vpop.f32.mrb[0].mxu0
      %v547 = vpop.f32.mrb[0].mxu0
      %v548 = vadd.f32 0.0, %v547
      %v549 = vpop.f32.mrb[0].mxu0
      %550 = vmatprep.mubr.bf16.mxu0 0
      %551 = vmatmul.mubr.bf16.gmra.mrb[0].mxu0 %v402
      %v552 = vpop.f32.mrb[0].mxu0
      %v553 = vadd.f32 0.0, %v552
      %v554 = vpop.f32.mrb[0].mxu0
      %v555 = vpop.f32.mrb[0].mxu0
      %v556 = vadd.f32 0.0, %v555
      %v557 = vpop.f32.mrb[0].mxu0
      %558 = vmatprep.mubr.bf16.mxu0 0
      %559 = vmatmul.mubr.bf16.gmra.mrb[0].mxu0 %v405
      %v560 = vpop.f32.mrb[0].mxu0
      %v561 = vadd.f32 0.0, %v560
      %v562 = vpop.f32.mrb[0].mxu0
      %v563 = vpop.f32.mrb[0].mxu0
      %v564 = vadd.f32 0.0, %v563
      %v565 = vpop.f32.mrb[0].mxu0
      %566 = vmatprep.mubr.bf16.mxu0 0
      %567 = vmatmul.mubr.bf16.gmra.mrb[0].mxu0 %v408
      %v568 = vpop.f32.mrb[0].mxu0
      %v569 = vadd.f32 0.0, %v568
      %v570 = vpop.f32.mrb[0].mxu0
      %v571 = vpop.f32.mrb[0].mxu0
      %v572 = vadd.f32 0.0, %v571
      %v573 = vpop.f32.mrb[0].mxu0
      %574 = vdwg.mxu0
      %575 = vst [vmem:[%s194] sm:$0xff] %v449
      %576 = vst [vmem:[%s194 + $0x8] sm:$0xff] %v452
      %577 = vst [vmem:[%s194 + $0x10] sm:$0xff] %v457
      %578 = vst [vmem:[%s194 + $0x18] sm:$0xff] %v460
      %579 = vst [vmem:[%s194 + $0x20] sm:$0xff] %v465
      %580 = vst [vmem:[%s194 + $0x28] sm:$0xff] %v468
      %581 = vst [vmem:[%s194 + $0x30] sm:$0xff] %v473
      %582 = vst [vmem:[%s194 + $0x38] sm:$0xff] %v476
      %583 = vst [vmem:[%s194 + $0x40] sm:$0xff] %v481
      %584 = vst [vmem:[%s194 + $0x48] sm:$0xff] %v484
      %585 = vst [vmem:[%s194 + $0x50] sm:$0xff] %v489
      %586 = vst [vmem:[%s194 + $0x58] sm:$0xff] %v492
      %587 = vst [vmem:[%s194 + $0x60] sm:$0xff] %v497
      %588 = vst [vmem:[%s194 + $0x68] sm:$0xff] %v500
      %589 = vst [vmem:[%s194 + $0x70] sm:$0xff] %v505
      %590 = vst [vmem:[%s194 + $0x78] sm:$0xff] %v508
      %591 = vst [vmem:[%s194 + $0x80] sm:$0xff] %v513
      %592 = vst [vmem:[%s194 + $0x88] sm:$0xff] %v516
      %593 = vst [vmem:[%s194 + $0x90] sm:$0xff] %v521
      %594 = vst [vmem:[%s194 + $0x98] sm:$0xff] %v524
      %595 = vst [vmem:[%s194 + $0xa0] sm:$0xff] %v529
      %596 = vst [vmem:[%s194 + $0xa8] sm:$0xff] %v532
      %597 = vst [vmem:[%s194 + $0xb0] sm:$0xff] %v537
      %598 = vst [vmem:[%s194 + $0xb8] sm:$0xff] %v540
      %599 = vst [vmem:[%s194 + $0xc0] sm:$0xff] %v545
      %600 = vst [vmem:[%s194 + $0xc8] sm:$0xff] %v548
      %601 = vst [vmem:[%s194 + $0xd0] sm:$0xff] %v553
      %602 = vst [vmem:[%s194 + $0xd8] sm:$0xff] %v556
      %603 = vst [vmem:[%s194 + $0xe0] sm:$0xff] %v561
      %604 = vst [vmem:[%s194 + $0xe8] sm:$0xff] %v564
      %605 = vst [vmem:[%s194 + $0xf0] sm:$0xff] %v569
      %606 = vst [vmem:[%s194 + $0xf8] sm:$0xff] %v572
      %p607 = scmp.eq.s32.totalorder %s16, 0
      // Predicated region
      $region29: #{inception_block_forward.12} parent=27 // pred_check
        %p608 = pneg %p607
      $region30: #{inception_block_forward.12} parent=27 // pred_check_branch
        %610 = sbr.rel (%p608) target = $region32
      $region31: #{inception_block_forward.12} parent=27 // pred_region
        %611 = vst [vmem:[%s3] sm:$0x1] 0.0
        %612 = vst [vmem:[%s4] sm:$0x1] 0.0
      $region32: #{inception_block_forward.12} parent=27 // pred_fallthru
        _
      %v613 = vld [vmem:[%s3] sm:$0x1]
      %v614 = vadd.f32 %v449, %v452
      %v615 = vadd.f32 %v614, %v457
      %v616 = vadd.f32 %v615, %v460
      %v617 = vadd.f32 %v616, %v465
      %v618 = vadd.f32 %v617, %v468
      %v619 = vadd.f32 %v618, %v473
      %v620 = vadd.f32 %v619, %v476
      %v621 = vadd.f32 %v620, %v481
      %v622 = vadd.f32 %v621, %v484
      %v623 = vadd.f32 %v622, %v489
      %v624 = vadd.f32 %v623, %v492
      %v625 = vadd.f32 %v624, %v497
      %v626 = vadd.f32 %v625, %v500
      %v627 = vadd.f32 %v626, %v505
      %v628 = vadd.f32 %v627, %v508
      %v629 = vadd.f32 %v628, %v513
      %v630 = vadd.f32 %v629, %v516
      %v631 = vadd.f32 %v630, %v521
      %v632 = vadd.f32 %v631, %v524
      %v633 = vadd.f32 %v632, %v529
      %v634 = vadd.f32 %v633, %v532
      %v635 = vadd.f32 %v634, %v537
      %v636 = vadd.f32 %v635, %v540
      %v637 = vadd.f32 %v636, %v545
      %v638 = vadd.f32 %v637, %v548
      %v639 = vadd.f32 %v638, %v553
      %v640 = vadd.f32 %v639, %v556
      %v641 = vadd.f32 %v640, %v561
      %v642 = vadd.f32 %v641, %v564
      %v643 = vadd.f32 %v642, %v569
      %v644 = vadd.f32 %v643, %v572
      %v645 = vrot.slane %v644, 4
      %v646 = vadd.f32 %v644, %v645
      %v647 = vrot.slane %v646, 2
      %v648 = vadd.f32 %v646, %v647
      %v649 = vrot.slane %v648, 1
      %v650 = vadd.f32 %v648, %v649
      %v651 = vadd.f32 %v613, %v650
      %652 = vst [vmem:[%s3] sm:$0x1] %v651
      %v653 = vld [vmem:[%s4] sm:$0x1]
      %v654 = vmul.f32 %v449, %v449
      %v655 = vmul.f32 %v452, %v452
      %v656 = vmul.f32 %v457, %v457
      %v657 = vmul.f32 %v460, %v460
      %v658 = vmul.f32 %v465, %v465
      %v659 = vmul.f32 %v468, %v468
      %v660 = vmul.f32 %v473, %v473
      %v661 = vmul.f32 %v476, %v476
      %v662 = vmul.f32 %v481, %v481
      %v663 = vmul.f32 %v484, %v484
      %v664 = vmul.f32 %v489, %v489
      %v665 = vmul.f32 %v492, %v492
      %v666 = vmul.f32 %v497, %v497
      %v667 = vmul.f32 %v500, %v500
      %v668 = vmul.f32 %v505, %v505
      %v669 = vmul.f32 %v508, %v508
      %v670 = vmul.f32 %v513, %v513
      %v671 = vmul.f32 %v516, %v516
      %v672 = vmul.f32 %v521, %v521
      %v673 = vmul.f32 %v524, %v524
      %v674 = vmul.f32 %v529, %v529
      %v675 = vmul.f32 %v532, %v532
      %v676 = vmul.f32 %v537, %v537
      %v677 = vmul.f32 %v540, %v540
      %v678 = vmul.f32 %v545, %v545
      %v679 = vmul.f32 %v548, %v548
      %v680 = vmul.f32 %v553, %v553
      %v681 = vmul.f32 %v556, %v556
      %v682 = vmul.f32 %v561, %v561
      %v683 = vmul.f32 %v564, %v564
      %v684 = vmul.f32 %v569, %v569
      %v685 = vmul.f32 %v572, %v572
      %v686 = vadd.f32 %v654, %v655
      %v687 = vadd.f32 %v686, %v656
      %v688 = vadd.f32 %v687, %v657
      %v689 = vadd.f32 %v688, %v658
      %v690 = vadd.f32 %v689, %v659
      %v691 = vadd.f32 %v690, %v660
      %v692 = vadd.f32 %v691, %v661
      %v693 = vadd.f32 %v692, %v662
      %v694 = vadd.f32 %v693, %v663
      %v695 = vadd.f32 %v694, %v664
      %v696 = vadd.f32 %v695, %v665
      %v697 = vadd.f32 %v696, %v666
      %v698 = vadd.f32 %v697, %v667
      %v699 = vadd.f32 %v698, %v668
      %v700 = vadd.f32 %v699, %v669
      %v701 = vadd.f32 %v700, %v670
      %v702 = vadd.f32 %v701, %v671
      %v703 = vadd.f32 %v702, %v672
      %v704 = vadd.f32 %v703, %v673
      %v705 = vadd.f32 %v704, %v674
      %v706 = vadd.f32 %v705, %v675
      %v707 = vadd.f32 %v706, %v676
      %v708 = vadd.f32 %v707, %v677
      %v709 = vadd.f32 %v708, %v678
      %v710 = vadd.f32 %v709, %v679
      %v711 = vadd.f32 %v710, %v680
      %v712 = vadd.f32 %v711, %v681
      %v713 = vadd.f32 %v712, %v682
      %v714 = vadd.f32 %v713, %v683
      %v715 = vadd.f32 %v714, %v684
      %v716 = vadd.f32 %v715, %v685
      %v717 = vrot.slane %v716, 4
      %v718 = vadd.f32 %v716, %v717
      %v719 = vrot.slane %v718, 2
      %v720 = vadd.f32 %v718, %v719
      %v721 = vrot.slane %v720, 1
      %v722 = vadd.f32 %v720, %v721
      %v723 = vadd.f32 %v653, %v722
      %724 = vst [vmem:[%s4] sm:$0x1] %v723
      %s725 = smul.u32 32, %s16
      %p726 = scmp.lt.s32.totalorder %s725, 63
      %s727 = scalar_select %p726, %s725, 63
      %s728 = smul.addr %s727, 8
      %s729 = scalar_lea.vmem %s2, %s728
      // Predicated region
      $region33: #{inception_block_forward.12} parent=27 // pred_check
        %p730 = pneg %p81
      $region34: #{inception_block_forward.12} parent=27 // pred_check_branch
        %732 = sbr.rel (%p730) target = $region36
      $region35: #{inception_block_forward.12} parent=27 // pred_region
        %s733 = smul.u32 32, %s16
      $region36: #{inception_block_forward.12} parent=27 // pred_fallthru
        _
      // Predicated region
      $region37: #{inception_block_forward.12} parent=27 // pred_check
        %p734 = pneg %p102
      $region38: #{inception_block_forward.12} parent=27 // pred_check_branch
        %736 = sbr.rel (%p734) target = $region40
      $region39: #{inception_block_forward.12} parent=27 // pred_region
        _
      $region40: #{inception_block_forward.12} parent=27 // pred_fallthru
        _
      // Predicated region
      $region41: #{inception_block_forward.12} parent=27 // pred_check
        %p737 = pneg %p123
      $region42: #{inception_block_forward.12} parent=27 // pred_check_branch
        %739 = sbr.rel (%p737) target = $region44
      $region43: #{inception_block_forward.12} parent=27 // pred_region
        _
      $region44: #{inception_block_forward.12} parent=27 // pred_fallthru
        _
      // Predicated region
      $region45: #{inception_block_forward.12} parent=27 // pred_check
        %p740 = pneg %p102
      $region46: #{inception_block_forward.12} parent=27 // pred_check_branch
        %742 = sbr.rel (%p740) target = $region48
      $region47: #{inception_block_forward.12} parent=27 // pred_region
        _
      $region48: #{inception_block_forward.12} parent=27 // pred_fallthru
        _
      // Predicated region
      $region49: #{inception_block_forward.12} parent=27 // pred_check
        %p743 = pneg %p123
      $region50: #{inception_block_forward.12} parent=27 // pred_check_branch
        %745 = sbr.rel (%p743) target = $region52
      $region51: #{inception_block_forward.12} parent=27 // pred_region
        _
      $region52: #{inception_block_forward.12} parent=27 // pred_fallthru
        _
    $region28: #{inception_block_forward.12} parent=5 // pred_fallthru
      _
    %p746 = scmp.le.s32.totalorder 2, %s11
    // Predicated region
    $region53: #{inception_block_forward.12} parent=5 // pred_check
      %p747 = pneg %p746
    $region54: #{inception_block_forward.12} parent=5 // pred_check_branch
      %749 = sbr.rel (%p747) target = $region56
    $region55: #{inception_block_forward.12} parent=5 // pred_region
      %s750 = ssub.s32 %s11, 2
      // Predicated region
      $region57: #{inception_block_forward.12} parent=55 // pred_check
        %p751 = pneg %p87
      $region58: #{inception_block_forward.12} parent=55 // pred_check_branch
        %753 = sbr.rel (%p751) target = $region60
      $region59: #{inception_block_forward.12} parent=55 // pred_region
        %s754 = smul.u32 32, %s17
        %p755 = scmp.lt.s32.totalorder %s754, 63
        %s756 = scalar_select %p755, %s754, 63
        %s757 = smul.addr %s756, 8
        %s758 = scalar_lea.vmem %s2, %s757
      $region60: #{inception_block_forward.12} parent=55 // pred_fallthru
        _
    $region56: #{inception_block_forward.12} parent=5 // pred_fallthru
      _
  $region6: #{inception_block_forward.12} parent=0 // loop_footer
    %s15 = sadd.s32 1, %s11
  $region7: #{inception_block_forward.12} parent=0 // loop_footer_branch
    %10 = sbr.rel target = $region3
  $region8: #{inception_block_forward.12} parent=0 // loop_exit
    _

</llo_original>
